<compile_context>
chip_gen: v6e
topology: v6e:2x2x1
jax: 0.10.0
libtpu: 0.0.40
codegen_flags: <defaults>
</compile_context>

<pallas_src>
import functools

import jax
import jax.numpy as jnp
from jax.experimental import pallas as pl
from jax.experimental.pallas import tpu as pltpu


# ----------------------------------------------------------------------------
# Fused kernel: one grid step == TB batch elements.
# ----------------------------------------------------------------------------
def _fused_attention_kernel(x_ref, wqkv_ref, bqkv_ref, wproj_ref, bproj_ref,
                            o_ref, *, num_heads):
    """
    x_ref      : (TB, N, C)  input activations (f32)
    wqkv_ref   : (C, 3C)     qkv weight, bf16, scale pre-folded into q columns
    bqkv_ref   : (1, 3C)     qkv bias, f32, scale pre-folded into q columns
    wproj_ref  : (C, C)      output-projection weight, bf16
    bproj_ref  : (1, C)      output-projection bias, f32
    o_ref      : (TB, N, C)  output (f32)
    """
    TB, N, C = x_ref.shape
    H = num_heads
    D = C // H
    R = TB * N                     # rows fed to the projection matmuls
    G = TB * H                     # batch dim of the head-batched attention
    mxu_dtype = wqkv_ref.dtype

    # --- qkv projection on all TB*N rows: (R, C) @ (C, 3C) + b, f32 accumulation ---
    x2d = x_ref[...].reshape(R, C).astype(mxu_dtype)          # cast x once
    qkv = jnp.dot(x2d, wqkv_ref[...],
                  preferred_element_type=jnp.float32) + bqkv_ref[...]   # (R, 3C) f32

    # --- arrange q/k/v head-batched: (TB*H, N, D), batches kept separate from heads ---
    def gather_heads(base):
        cols = [qkv[:, base + h * D: base + (h + 1) * D].reshape(TB, N, D)
                for h in range(H)]                            # 2-D lane slices (static)
        return jnp.stack(cols, axis=1).reshape(G, N, D)       # (TB, H, N, D) -> (G, N, D)

    q_heads = gather_heads(0 * C).astype(mxu_dtype)           # scale already folded in
    k_heads = gather_heads(1 * C).astype(mxu_dtype)
    v_heads = gather_heads(2 * C).astype(mxu_dtype)

    # --- batched attention: scores = q @ k^T (contract D, batch G), f32 softmax ---
    s = jax.lax.dot_general(q_heads, k_heads, (((2,), (2,)), ((0,), (0,))),
                            preferred_element_type=jnp.float32)          # (G, N, N)
    m = jnp.max(s, axis=-1, keepdims=True)
    p = jnp.exp(s - m)                                                   # unnormalized
    l = jnp.sum(p, axis=-1, keepdims=True)                               # (G, N, 1)

    o_heads = jax.lax.dot_general(p.astype(mxu_dtype), v_heads,
                                  (((2,), (1,)), ((0,), (0,))),
                                  preferred_element_type=jnp.float32)    # (G, N, D)
    # Deferred normalization on the (N, D) result via the EUP approximate reciprocal.
    o_heads = o_heads * pl.reciprocal(l, approx=True)

    # --- merge heads in registers (one lane concat, no masked partial stores) ---
    o4 = o_heads.reshape(TB, H, N, D)
    merged = jnp.concatenate([o4[:, h] for h in range(H)], axis=-1)      # (TB, N, C)

    # --- output projection on TB*N rows and a single full-width store ---
    out = jnp.dot(merged.reshape(R, C).astype(mxu_dtype), wproj_ref[...],
                  preferred_element_type=jnp.float32) + bproj_ref[...]   # (R, C) f32
    o_ref[...] = out.reshape(TB, N, C).astype(o_ref.dtype)


def _pick_batch_block(B, N, target_rows=256):
    """Largest divisor TB of B with TB*N <= target_rows (>=1). Targets 256-row MXU
    tiles on v6e/v7x (128 is enough on v5e); fewer grid steps also amortize the
    per-step overhead, at the cost of fewer parallel steps for v7x's 2 TCs."""
    tb = 1
    for cand in range(1, B + 1):
        if B % cand == 0 and cand * N <= max(target_rows, N):
            tb = cand
    return tb


def fused_attention(x, w_qkv, b_qkv, w_proj, b_proj, *, num_heads, batch_block=None):
    """x: (B, N, C) f32 -> (B, N, C) f32. Single fused pallas_call, grid over batch blocks.
    w_qkv / w_proj are expected pre-cast to the MXU dtype with scale pre-folded."""
    B, N, C = x.shape
    TB = batch_block if batch_block is not None else _pick_batch_block(B, N)
    assert B % TB == 0

    kernel = functools.partial(_fused_attention_kernel, num_heads=num_heads)
    return pl.pallas_call(
        kernel,
        out_shape=jax.ShapeDtypeStruct((B, N, C), jnp.float32),
        grid=(B // TB,),
        in_specs=[
            pl.BlockSpec((TB, N, C), lambda b: (b, 0, 0)),    # x: TB batches per step
            pl.BlockSpec((C, 3 * C), lambda b: (0, 0)),        # weights: resident
            pl.BlockSpec((1, 3 * C), lambda b: (0, 0)),
            pl.BlockSpec((C, C), lambda b: (0, 0)),
            pl.BlockSpec((1, C), lambda b: (0, 0)),
        ],
        out_specs=pl.BlockSpec((TB, N, C), lambda b: (b, 0, 0)),
        compiler_params=pltpu.CompilerParams(
            dimension_semantics=("parallel",),                 # v7x: 2 TCs split steps
            vmem_limit_bytes=32 * 1024 * 1024),
    )(x, w_qkv, b_qkv, w_proj, b_proj)


# ----------------------------------------------------------------------------
# Module wrapper.
# ----------------------------------------------------------------------------
class AttentionPallas:
    def __init__(self, dim, num_heads=8, qkv_bias=False, qk_scale=None,
                 attn_drop_ratio=0.0, proj_drop_ratio=0.0, key=None,
                 mxu_dtype=jnp.bfloat16):
        self.dim = dim
        self.num_heads = num_heads
        head_dim = dim // num_heads
        # `is not None` so qk_scale=0.0 is honoured.
        self.scale = qk_scale if qk_scale is not None else head_dim ** (-0.5)
        self.qkv_bias = qkv_bias
        self.mxu_dtype = mxu_dtype

        key = key if key is not None else jax.random.PRNGKey(0)
        k1, k2, k3, k4 = jax.random.split(key, 4)
        bound = 1.0 / (dim ** 0.5)
        # Master f32 weights stored (in, out) so the kernel computes x @ W directly
        # (equivalent to PyTorch's x @ weight.T with weight (out, in)).
        self.w_qkv = jax.random.uniform(k1, (dim, 3 * dim), jnp.float32, -bound, bound)
        self.b_qkv = (jax.random.uniform(k2, (1, 3 * dim), jnp.float32, -bound, bound)
                      if qkv_bias else jnp.zeros((1, 3 * dim), jnp.float32))
        self.w_proj = jax.random.uniform(k3, (dim, dim), jnp.float32, -bound, bound)
        self.b_proj = jax.random.uniform(k4, (1, dim), jnp.float32, -bound, bound)

        # Device-side weights: softmax scale folded into the q columns (one-time,
        # host-side), weights pre-cast to the MXU dtype, biases kept f32.
        self.w_qkv_dev = self.w_qkv.at[:, :dim].multiply(self.scale).astype(mxu_dtype)
        self.b_qkv_dev = self.b_qkv.at[:, :dim].multiply(self.scale)
        self.w_proj_dev = self.w_proj.astype(mxu_dtype)
        self.b_proj_dev = self.b_proj

    def __call__(self, x):
        # attn_drop / proj_drop are identity (ratio 0.0 / eval mode).
        return fused_attention(x, self.w_qkv_dev, self.b_qkv_dev,
                               self.w_proj_dev, self.b_proj_dev,
                               num_heads=self.num_heads)


# Pure-JAX f32 reference (faithful to the PyTorch module) for a correctness check.
def _reference(attn_mod, x):
    B, N, C = x.shape
    H = attn_mod.num_heads
    D = C // H
    qkv = x.reshape(B * N, C) @ attn_mod.w_qkv + attn_mod.b_qkv
    qkv = qkv.reshape(B, N, 3, H, D).transpose(2, 0, 3, 1, 4)
    q, k, v = qkv[0], qkv[1], qkv[2]
    s = jnp.einsum("bhqd,bhkd->bhqk", q, k) * attn_mod.scale
    p = jax.nn.softmax(s, axis=-1)
    o = jnp.einsum("bhqk,bhkd->bhqd", p, v)
    o = o.transpose(0, 2, 1, 3).reshape(B * N, C)
    return (o @ attn_mod.w_proj + attn_mod.b_proj).reshape(B, N, C)


if __name__ == "__main__":
    key = jax.random.PRNGKey(0)
    kx, kp = jax.random.split(key)

    B, N, C = 2, 8, 32          # batch=2, seq=8, hidden=32, 8 heads -> head_dim=4
    x = jax.random.normal(kx, (B, N, C), jnp.float32)

    attn = AttentionPallas(dim=C, num_heads=8, qkv_bias=False, key=kp)

    out = jax.block_until_ready(attn(x))
    ref = _reference(attn, x)

    assert out.shape == (B, N, C)
    # bf16 MXU operands / bf16 weights + approx reciprocal vs full-f32 reference.
    assert jnp.allclose(out, ref, atol=5e-2, rtol=5e-2)

    print("KERNEL_OK")
</pallas_src>

<mosaic_0001>
module attributes {stable_mosaic.version = 11 : i64} {
  func.func @_fused_attention_kernel(%arg0: i32, %arg1: memref<2x8x32xf32, #tpu.memory_space<vmem>>, %arg2: memref<32x96xbf16, #tpu.memory_space<vmem>>, %arg3: memref<1x96xf32, #tpu.memory_space<vmem>>, %arg4: memref<32x32xbf16, #tpu.memory_space<vmem>>, %arg5: memref<1x32xf32, #tpu.memory_space<vmem>>, %arg6: memref<2x8x32xf32, #tpu.memory_space<vmem>>) attributes {dimension_semantics = [#tpu.dimension_semantics<parallel>], iteration_bounds = array<i64: 1>, scalar_prefetch = 0 : i64, scratch_operands = 0 : i64, tpu.core_type = #tpu.core_type<tc>, window_params = [{transform_indices = @transform_0, window_bounds = array<i64: 2, 8, 32>}, {pipeline_mode = #tpu.pipeline_mode<synchronous>, transform_indices = @transform_1, window_bounds = array<i64: 32, 96>}, {pipeline_mode = #tpu.pipeline_mode<synchronous>, transform_indices = @transform_2, window_bounds = array<i64: 1, 96>}, {pipeline_mode = #tpu.pipeline_mode<synchronous>, transform_indices = @transform_3, window_bounds = array<i64: 32, 32>}, {pipeline_mode = #tpu.pipeline_mode<synchronous>, transform_indices = @transform_4, window_bounds = array<i64: 1, 32>}, {transform_indices = @transform_5, window_bounds = array<i64: 2, 8, 32>}]} {
    %c0 = arith.constant 0 : index
    %c0_0 = arith.constant 0 : index
    %c0_1 = arith.constant 0 : index
    %0 = vector.load %arg1[%c0, %c0_0, %c0_1] : memref<2x8x32xf32, #tpu.memory_space<vmem>>, vector<2x8x32xf32>
    %1 = vector.shape_cast %0 : vector<2x8x32xf32> to vector<16x32xf32>
    %2 = arith.truncf %1 : vector<16x32xf32> to vector<16x32xbf16>
    %c0_2 = arith.constant 0 : index
    %c0_3 = arith.constant 0 : index
    %3 = vector.load %arg2[%c0_2, %c0_3] : memref<32x96xbf16, #tpu.memory_space<vmem>>, vector<32x96xbf16>
    %cst = arith.constant dense<0.000000e+00> : vector<16x96xf32>
    %4 = tpu.matmul %2, %3, %cst {dimension_numbers = #tpu.dot_dimension_numbers<[1], [0], [0], [1], [0, 0, 1, 1], [], []>} : vector<16x32xbf16>, vector<32x96xbf16>, vector<16x96xf32> -> vector<16x96xf32>
    %c0_4 = arith.constant 0 : index
    %c0_5 = arith.constant 0 : index
    %5 = vector.load %arg3[%c0_4, %c0_5] : memref<1x96xf32, #tpu.memory_space<vmem>>, vector<1x96xf32>
    %6 = vector.broadcast %5 : vector<1x96xf32> to vector<16x96xf32>
    %7 = arith.addf %4, %6 : vector<16x96xf32>
    %8 = vector.extract_strided_slice %7 {offsets = [0, 0], sizes = [16, 4], strides = [1, 1]} : vector<16x96xf32> to vector<16x4xf32>
    %9 = vector.shape_cast %8 : vector<16x4xf32> to vector<2x8x4xf32>
    %10 = vector.extract_strided_slice %7 {offsets = [0, 4], sizes = [16, 4], strides = [1, 1]} : vector<16x96xf32> to vector<16x4xf32>
    %11 = vector.shape_cast %10 : vector<16x4xf32> to vector<2x8x4xf32>
    %12 = vector.extract_strided_slice %7 {offsets = [0, 8], sizes = [16, 4], strides = [1, 1]} : vector<16x96xf32> to vector<16x4xf32>
    %13 = vector.shape_cast %12 : vector<16x4xf32> to vector<2x8x4xf32>
    %14 = vector.extract_strided_slice %7 {offsets = [0, 12], sizes = [16, 4], strides = [1, 1]} : vector<16x96xf32> to vector<16x4xf32>
    %15 = vector.shape_cast %14 : vector<16x4xf32> to vector<2x8x4xf32>
    %16 = vector.extract_strided_slice %7 {offsets = [0, 16], sizes = [16, 4], strides = [1, 1]} : vector<16x96xf32> to vector<16x4xf32>
    %17 = vector.shape_cast %16 : vector<16x4xf32> to vector<2x8x4xf32>
    %18 = vector.extract_strided_slice %7 {offsets = [0, 20], sizes = [16, 4], strides = [1, 1]} : vector<16x96xf32> to vector<16x4xf32>
    %19 = vector.shape_cast %18 : vector<16x4xf32> to vector<2x8x4xf32>
    %20 = vector.extract_strided_slice %7 {offsets = [0, 24], sizes = [16, 4], strides = [1, 1]} : vector<16x96xf32> to vector<16x4xf32>
    %21 = vector.shape_cast %20 : vector<16x4xf32> to vector<2x8x4xf32>
    %22 = vector.extract_strided_slice %7 {offsets = [0, 28], sizes = [16, 4], strides = [1, 1]} : vector<16x96xf32> to vector<16x4xf32>
    %23 = vector.shape_cast %22 : vector<16x4xf32> to vector<2x8x4xf32>
    %24 = vector.shape_cast %9 : vector<2x8x4xf32> to vector<2x1x8x4xf32>
    %25 = vector.shape_cast %11 : vector<2x8x4xf32> to vector<2x1x8x4xf32>
    %26 = vector.shape_cast %13 : vector<2x8x4xf32> to vector<2x1x8x4xf32>
    %27 = vector.shape_cast %15 : vector<2x8x4xf32> to vector<2x1x8x4xf32>
    %28 = vector.shape_cast %17 : vector<2x8x4xf32> to vector<2x1x8x4xf32>
    %29 = vector.shape_cast %19 : vector<2x8x4xf32> to vector<2x1x8x4xf32>
    %30 = vector.shape_cast %21 : vector<2x8x4xf32> to vector<2x1x8x4xf32>
    %31 = vector.shape_cast %23 : vector<2x8x4xf32> to vector<2x1x8x4xf32>
    %32 = tpu.concatenate %24, %25, %26, %27, %28, %29, %30, %31 in 1 : vector<2x1x8x4xf32>, vector<2x1x8x4xf32>, vector<2x1x8x4xf32>, vector<2x1x8x4xf32>, vector<2x1x8x4xf32>, vector<2x1x8x4xf32>, vector<2x1x8x4xf32>, vector<2x1x8x4xf32> -> vector<2x8x8x4xf32>
    %33 = vector.shape_cast %32 : vector<2x8x8x4xf32> to vector<16x8x4xf32>
    %34 = arith.truncf %33 : vector<16x8x4xf32> to vector<16x8x4xbf16>
    %35 = vector.extract_strided_slice %7 {offsets = [0, 32], sizes = [16, 4], strides = [1, 1]} : vector<16x96xf32> to vector<16x4xf32>
    %36 = vector.shape_cast %35 : vector<16x4xf32> to vector<2x8x4xf32>
    %37 = vector.extract_strided_slice %7 {offsets = [0, 36], sizes = [16, 4], strides = [1, 1]} : vector<16x96xf32> to vector<16x4xf32>
    %38 = vector.shape_cast %37 : vector<16x4xf32> to vector<2x8x4xf32>
    %39 = vector.extract_strided_slice %7 {offsets = [0, 40], sizes = [16, 4], strides = [1, 1]} : vector<16x96xf32> to vector<16x4xf32>
    %40 = vector.shape_cast %39 : vector<16x4xf32> to vector<2x8x4xf32>
    %41 = vector.extract_strided_slice %7 {offsets = [0, 44], sizes = [16, 4], strides = [1, 1]} : vector<16x96xf32> to vector<16x4xf32>
    %42 = vector.shape_cast %41 : vector<16x4xf32> to vector<2x8x4xf32>
    %43 = vector.extract_strided_slice %7 {offsets = [0, 48], sizes = [16, 4], strides = [1, 1]} : vector<16x96xf32> to vector<16x4xf32>
    %44 = vector.shape_cast %43 : vector<16x4xf32> to vector<2x8x4xf32>
    %45 = vector.extract_strided_slice %7 {offsets = [0, 52], sizes = [16, 4], strides = [1, 1]} : vector<16x96xf32> to vector<16x4xf32>
    %46 = vector.shape_cast %45 : vector<16x4xf32> to vector<2x8x4xf32>
    %47 = vector.extract_strided_slice %7 {offsets = [0, 56], sizes = [16, 4], strides = [1, 1]} : vector<16x96xf32> to vector<16x4xf32>
    %48 = vector.shape_cast %47 : vector<16x4xf32> to vector<2x8x4xf32>
    %49 = vector.extract_strided_slice %7 {offsets = [0, 60], sizes = [16, 4], strides = [1, 1]} : vector<16x96xf32> to vector<16x4xf32>
    %50 = vector.shape_cast %49 : vector<16x4xf32> to vector<2x8x4xf32>
    %51 = vector.shape_cast %36 : vector<2x8x4xf32> to vector<2x1x8x4xf32>
    %52 = vector.shape_cast %38 : vector<2x8x4xf32> to vector<2x1x8x4xf32>
    %53 = vector.shape_cast %40 : vector<2x8x4xf32> to vector<2x1x8x4xf32>
    %54 = vector.shape_cast %42 : vector<2x8x4xf32> to vector<2x1x8x4xf32>
    %55 = vector.shape_cast %44 : vector<2x8x4xf32> to vector<2x1x8x4xf32>
    %56 = vector.shape_cast %46 : vector<2x8x4xf32> to vector<2x1x8x4xf32>
    %57 = vector.shape_cast %48 : vector<2x8x4xf32> to vector<2x1x8x4xf32>
    %58 = vector.shape_cast %50 : vector<2x8x4xf32> to vector<2x1x8x4xf32>
    %59 = tpu.concatenate %51, %52, %53, %54, %55, %56, %57, %58 in 1 : vector<2x1x8x4xf32>, vector<2x1x8x4xf32>, vector<2x1x8x4xf32>, vector<2x1x8x4xf32>, vector<2x1x8x4xf32>, vector<2x1x8x4xf32>, vector<2x1x8x4xf32>, vector<2x1x8x4xf32> -> vector<2x8x8x4xf32>
    %60 = vector.shape_cast %59 : vector<2x8x8x4xf32> to vector<16x8x4xf32>
    %61 = arith.truncf %60 : vector<16x8x4xf32> to vector<16x8x4xbf16>
    %62 = vector.extract_strided_slice %7 {offsets = [0, 64], sizes = [16, 4], strides = [1, 1]} : vector<16x96xf32> to vector<16x4xf32>
    %63 = vector.shape_cast %62 : vector<16x4xf32> to vector<2x8x4xf32>
    %64 = vector.extract_strided_slice %7 {offsets = [0, 68], sizes = [16, 4], strides = [1, 1]} : vector<16x96xf32> to vector<16x4xf32>
    %65 = vector.shape_cast %64 : vector<16x4xf32> to vector<2x8x4xf32>
    %66 = vector.extract_strided_slice %7 {offsets = [0, 72], sizes = [16, 4], strides = [1, 1]} : vector<16x96xf32> to vector<16x4xf32>
    %67 = vector.shape_cast %66 : vector<16x4xf32> to vector<2x8x4xf32>
    %68 = vector.extract_strided_slice %7 {offsets = [0, 76], sizes = [16, 4], strides = [1, 1]} : vector<16x96xf32> to vector<16x4xf32>
    %69 = vector.shape_cast %68 : vector<16x4xf32> to vector<2x8x4xf32>
    %70 = vector.extract_strided_slice %7 {offsets = [0, 80], sizes = [16, 4], strides = [1, 1]} : vector<16x96xf32> to vector<16x4xf32>
    %71 = vector.shape_cast %70 : vector<16x4xf32> to vector<2x8x4xf32>
    %72 = vector.extract_strided_slice %7 {offsets = [0, 84], sizes = [16, 4], strides = [1, 1]} : vector<16x96xf32> to vector<16x4xf32>
    %73 = vector.shape_cast %72 : vector<16x4xf32> to vector<2x8x4xf32>
    %74 = vector.extract_strided_slice %7 {offsets = [0, 88], sizes = [16, 4], strides = [1, 1]} : vector<16x96xf32> to vector<16x4xf32>
    %75 = vector.shape_cast %74 : vector<16x4xf32> to vector<2x8x4xf32>
    %76 = vector.extract_strided_slice %7 {offsets = [0, 92], sizes = [16, 4], strides = [1, 1]} : vector<16x96xf32> to vector<16x4xf32>
    %77 = vector.shape_cast %76 : vector<16x4xf32> to vector<2x8x4xf32>
    %78 = vector.shape_cast %63 : vector<2x8x4xf32> to vector<2x1x8x4xf32>
    %79 = vector.shape_cast %65 : vector<2x8x4xf32> to vector<2x1x8x4xf32>
    %80 = vector.shape_cast %67 : vector<2x8x4xf32> to vector<2x1x8x4xf32>
    %81 = vector.shape_cast %69 : vector<2x8x4xf32> to vector<2x1x8x4xf32>
    %82 = vector.shape_cast %71 : vector<2x8x4xf32> to vector<2x1x8x4xf32>
    %83 = vector.shape_cast %73 : vector<2x8x4xf32> to vector<2x1x8x4xf32>
    %84 = vector.shape_cast %75 : vector<2x8x4xf32> to vector<2x1x8x4xf32>
    %85 = vector.shape_cast %77 : vector<2x8x4xf32> to vector<2x1x8x4xf32>
    %86 = tpu.concatenate %78, %79, %80, %81, %82, %83, %84, %85 in 1 : vector<2x1x8x4xf32>, vector<2x1x8x4xf32>, vector<2x1x8x4xf32>, vector<2x1x8x4xf32>, vector<2x1x8x4xf32>, vector<2x1x8x4xf32>, vector<2x1x8x4xf32>, vector<2x1x8x4xf32> -> vector<2x8x8x4xf32>
    %87 = vector.shape_cast %86 : vector<2x8x8x4xf32> to vector<16x8x4xf32>
    %88 = arith.truncf %87 : vector<16x8x4xf32> to vector<16x8x4xbf16>
    %cst_6 = arith.constant dense<0.000000e+00> : vector<16x8x8xf32>
    %89 = tpu.matmul %34, %61, %cst_6 {dimension_numbers = #tpu.dot_dimension_numbers<[2], [2], [1], [1], [0, 0, 0, 1, 1, 1], [0], [0]>} : vector<16x8x4xbf16>, vector<16x8x4xbf16>, vector<16x8x8xf32> -> vector<16x8x8xf32>
    %cst_7 = arith.constant dense<0xFF800000> : vector<16x8xf32>
    %90 = vector.multi_reduction <maximumf>, %89, %cst_7 [2] : vector<16x8x8xf32> to vector<16x8xf32>
    %91 = vector.shape_cast %90 : vector<16x8xf32> to vector<16x8x1xf32>
    %92 = vector.broadcast %91 : vector<16x8x1xf32> to vector<16x8x8xf32>
    %93 = arith.subf %89, %92 : vector<16x8x8xf32>
    %94 = math.exp %93 : vector<16x8x8xf32>
    %cst_8 = arith.constant dense<0.000000e+00> : vector<16x8xf32>
    %95 = vector.multi_reduction <add>, %94, %cst_8 [2] : vector<16x8x8xf32> to vector<16x8xf32>
    %96 = vector.shape_cast %95 : vector<16x8xf32> to vector<16x8x1xf32>
    %97 = arith.truncf %94 : vector<16x8x8xf32> to vector<16x8x8xbf16>
    %cst_9 = arith.constant dense<0.000000e+00> : vector<16x8x4xf32>
    %98 = tpu.matmul %97, %88, %cst_9 {dimension_numbers = #tpu.dot_dimension_numbers<[2], [1], [1], [2], [0, 0, 0, 1, 1, 2], [0], [0]>} : vector<16x8x8xbf16>, vector<16x8x4xbf16>, vector<16x8x4xf32> -> vector<16x8x4xf32>
    %99 = tpu.reciprocal %96 {approx = true} : vector<16x8x1xf32> -> vector<16x8x1xf32>
    %100 = vector.broadcast %99 : vector<16x8x1xf32> to vector<16x8x4xf32>
    %101 = arith.mulf %98, %100 : vector<16x8x4xf32>
    %102 = vector.shape_cast %101 : vector<16x8x4xf32> to vector<2x8x8x4xf32>
    %103 = vector.extract_strided_slice %102 {offsets = [0, 0, 0, 0], sizes = [2, 1, 8, 4], strides = [1, 1, 1, 1]} : vector<2x8x8x4xf32> to vector<2x1x8x4xf32>
    %104 = vector.shape_cast %103 : vector<2x1x8x4xf32> to vector<2x8x4xf32>
    %105 = vector.extract_strided_slice %102 {offsets = [0, 1, 0, 0], sizes = [2, 1, 8, 4], strides = [1, 1, 1, 1]} : vector<2x8x8x4xf32> to vector<2x1x8x4xf32>
    %106 = vector.shape_cast %105 : vector<2x1x8x4xf32> to vector<2x8x4xf32>
    %107 = vector.extract_strided_slice %102 {offsets = [0, 2, 0, 0], sizes = [2, 1, 8, 4], strides = [1, 1, 1, 1]} : vector<2x8x8x4xf32> to vector<2x1x8x4xf32>
    %108 = vector.shape_cast %107 : vector<2x1x8x4xf32> to vector<2x8x4xf32>
    %109 = vector.extract_strided_slice %102 {offsets = [0, 3, 0, 0], sizes = [2, 1, 8, 4], strides = [1, 1, 1, 1]} : vector<2x8x8x4xf32> to vector<2x1x8x4xf32>
    %110 = vector.shape_cast %109 : vector<2x1x8x4xf32> to vector<2x8x4xf32>
    %111 = vector.extract_strided_slice %102 {offsets = [0, 4, 0, 0], sizes = [2, 1, 8, 4], strides = [1, 1, 1, 1]} : vector<2x8x8x4xf32> to vector<2x1x8x4xf32>
    %112 = vector.shape_cast %111 : vector<2x1x8x4xf32> to vector<2x8x4xf32>
    %113 = vector.extract_strided_slice %102 {offsets = [0, 5, 0, 0], sizes = [2, 1, 8, 4], strides = [1, 1, 1, 1]} : vector<2x8x8x4xf32> to vector<2x1x8x4xf32>
    %114 = vector.shape_cast %113 : vector<2x1x8x4xf32> to vector<2x8x4xf32>
    %115 = vector.extract_strided_slice %102 {offsets = [0, 6, 0, 0], sizes = [2, 1, 8, 4], strides = [1, 1, 1, 1]} : vector<2x8x8x4xf32> to vector<2x1x8x4xf32>
    %116 = vector.shape_cast %115 : vector<2x1x8x4xf32> to vector<2x8x4xf32>
    %117 = vector.extract_strided_slice %102 {offsets = [0, 7, 0, 0], sizes = [2, 1, 8, 4], strides = [1, 1, 1, 1]} : vector<2x8x8x4xf32> to vector<2x1x8x4xf32>
    %118 = vector.shape_cast %117 : vector<2x1x8x4xf32> to vector<2x8x4xf32>
    %119 = tpu.concatenate %104, %106, %108, %110, %112, %114, %116, %118 in 2 : vector<2x8x4xf32>, vector<2x8x4xf32>, vector<2x8x4xf32>, vector<2x8x4xf32>, vector<2x8x4xf32>, vector<2x8x4xf32>, vector<2x8x4xf32>, vector<2x8x4xf32> -> vector<2x8x32xf32>
    %120 = vector.shape_cast %119 : vector<2x8x32xf32> to vector<16x32xf32>
    %121 = arith.truncf %120 : vector<16x32xf32> to vector<16x32xbf16>
    %c0_10 = arith.constant 0 : index
    %c0_11 = arith.constant 0 : index
    %122 = vector.load %arg4[%c0_10, %c0_11] : memref<32x32xbf16, #tpu.memory_space<vmem>>, vector<32x32xbf16>
    %cst_12 = arith.constant dense<0.000000e+00> : vector<16x32xf32>
    %123 = tpu.matmul %121, %122, %cst_12 {dimension_numbers = #tpu.dot_dimension_numbers<[1], [0], [0], [1], [0, 0, 1, 1], [], []>} : vector<16x32xbf16>, vector<32x32xbf16>, vector<16x32xf32> -> vector<16x32xf32>
    %c0_13 = arith.constant 0 : index
    %c0_14 = arith.constant 0 : index
    %124 = vector.load %arg5[%c0_13, %c0_14] : memref<1x32xf32, #tpu.memory_space<vmem>>, vector<1x32xf32>
    %125 = vector.broadcast %124 : vector<1x32xf32> to vector<16x32xf32>
    %126 = arith.addf %123, %125 : vector<16x32xf32>
    %127 = vector.shape_cast %126 : vector<16x32xf32> to vector<2x8x32xf32>
    %c0_15 = arith.constant 0 : index
    %c0_16 = arith.constant 0 : index
    %c0_17 = arith.constant 0 : index
    %128 = vector.load %arg6[%c0_15, %c0_16, %c0_17] : memref<2x8x32xf32, #tpu.memory_space<vmem>>, vector<2x8x32xf32>
    tpu.vector_store %arg6[%c0_15, %c0_16, %c0_17], %127 {strides = array<i32>} : memref<2x8x32xf32, #tpu.memory_space<vmem>>, vector<2x8x32xf32>,
    return
  }
  func.func @transform_0(%arg0: i32) -> (i32, i32, i32) {
    %c0_i32 = arith.constant 0 : i32
    %c0_i32_0 = arith.constant 0 : i32
    %c0_i32_1 = arith.constant 0 : i32
    return %arg0, %c0_i32, %c0_i32_0 : i32, i32, i32
  }
  func.func @transform_1(%arg0: i32) -> (i32, i32) {
    %c0_i32 = arith.constant 0 : i32
    %c0_i32_0 = arith.constant 0 : i32
    %c0_i32_1 = arith.constant 0 : i32
    return %c0_i32, %c0_i32_0 : i32, i32
  }
  func.func @transform_2(%arg0: i32) -> (i32, i32) {
    %c0_i32 = arith.constant 0 : i32
    %c0_i32_0 = arith.constant 0 : i32
    %c0_i32_1 = arith.constant 0 : i32
    return %c0_i32, %c0_i32_0 : i32, i32
  }
  func.func @transform_3(%arg0: i32) -> (i32, i32) {
    %c0_i32 = arith.constant 0 : i32
    %c0_i32_0 = arith.constant 0 : i32
    %c0_i32_1 = arith.constant 0 : i32
    return %c0_i32, %c0_i32_0 : i32, i32
  }
  func.func @transform_4(%arg0: i32) -> (i32, i32) {
    %c0_i32 = arith.constant 0 : i32
    %c0_i32_0 = arith.constant 0 : i32
    %c0_i32_1 = arith.constant 0 : i32
    return %c0_i32, %c0_i32_0 : i32, i32
  }
  func.func @transform_5(%arg0: i32) -> (i32, i32, i32) {
    %c0_i32 = arith.constant 0 : i32
    %c0_i32_0 = arith.constant 0 : i32
    %c0_i32_1 = arith.constant 0 : i32
    return %arg0, %c0_i32, %c0_i32_0 : i32, i32, i32
  }
}

</mosaic_0001>

<llo_original>
// kernel: tpu_custom_call.1
$region0: #{tpu_custom_call.1}
  #allocation0 [shape = 'u32[]', space=smem, size = 0x4, offset = 0x4, fixed_abs, tag = 'smem constant byte address 0x4 - core index']
  #allocation1 [shape = 'u32[144,128]{1,0:T(1,128)}', space=vmem, size = 0x12000, scoped, tag = 'internal scratch']
  %s0 = inlined_call_operand.hbm [shape: f32[2,8,32], index: 0, kind: input, shape index: {}]
  %s1 = inlined_call_operand.hbm [shape: bf16[32,96], index: 1, kind: input, shape index: {}]
  %s2 = inlined_call_operand.vmem [shape: f32[1,96], index: 2, kind: input, shape index: {}]
  %s3 = inlined_call_operand.hbm [shape: bf16[32,32], index: 3, kind: input, shape index: {}]
  %s4 = inlined_call_operand.vmem [shape: f32[1,32], index: 4, kind: input, shape index: {}]
  %s5 = inlined_call_operand.hbm [shape: f32[2,8,32], index: 5, kind: output, shape index: {}]
  %s6 = sld [smem:[#allocation0]]
  $region42: #{tpu_custom_call.1} parent=0
    _
  %s8 = ssub.s32 1, %s6
  %s9 = scalar_select 0, %s8, %s6
  $region1: #{tpu_custom_call.1} parent=0
    #allocation2 [shape = 'u8[8192]{0}', space=vmem, size = 0x2000, scoped, tag = 'input window, operand 0, single buffered']
    #allocation3 [shape = 's32[1]{0}', space=sflag, size = 0x4, scoped, tag = 'scoped memory for tpu_custom_call.1']
    #allocation4 [shape = 's32[1]{0}', space=sflag, size = 0x4, scoped, tag = 'scoped memory for tpu_custom_call.1']
    #allocation5 [shape = 'u8[8192]{0}', space=vmem, size = 0x2000, scoped, tag = 'input window, operand 1, single buffered']
    #allocation6 [shape = 's32[1]{0}', space=sflag, size = 0x4, scoped, tag = 'scoped memory for tpu_custom_call.1']
    #allocation7 [shape = 'u8[8192]{0}', space=vmem, size = 0x2000, scoped, tag = 'input window, operand 3, single buffered']
    #allocation8 [shape = 'u8[8192]{0}', space=vmem, size = 0x2000, scoped, tag = 'output window, operand 0, single buffered']
    %10 = vsyncpa [#allocation3], 0
    %11 = vsyncpa [#allocation6], 0
    %12 = vsyncpa [#allocation4], 0
    // Predicated region
    $region2: #{tpu_custom_call.1} parent=1 // pred_check
      _
    $region3: #{tpu_custom_call.1} parent=1 // pred_check_branch
      %14 = sbr.rel (0) target = $region5
    $region4: #{tpu_custom_call.1} parent=1 // pred_region
      %s16 = ssub.s32 256, 256
      %17 = vsyncadd [#allocation3], %s16
      %s18 = sshll.u32 [#allocation2], 4
      %s19 = int_to_ptr.vmem [resolvable:$true] %s18
      %24 = dma.hbm_to_vmem [thread:$0]  %s0, 256, %s19, [#allocation3], 128, 128, 8
    $region5: #{tpu_custom_call.1} parent=1 // pred_fallthru
      _
    // Predicated region
    $region6: #{tpu_custom_call.1} parent=1 // pred_check
      _
    $region7: #{tpu_custom_call.1} parent=1 // pred_check_branch
      %26 = sbr.rel (0) target = $region9
    $region8: #{tpu_custom_call.1} parent=1 // pred_region
      %s28 = ssub.s32 256, 256
      %29 = vsyncadd [#allocation6], %s28
      %s30 = sshll.u32 [#allocation5], 4
      %s31 = int_to_ptr.vmem [resolvable:$true] %s30
      %36 = dma.hbm_to_vmem [thread:$0]  %s1, 256, %s31, [#allocation6], 64, 64, 4
    $region9: #{tpu_custom_call.1} parent=1 // pred_fallthru
      _
    // Predicated region
    $region10: #{tpu_custom_call.1} parent=1 // pred_check
      _
    $region11: #{tpu_custom_call.1} parent=1 // pred_check_branch
      %38 = sbr.rel (0) target = $region13
    $region12: #{tpu_custom_call.1} parent=1 // pred_region
      _
    $region13: #{tpu_custom_call.1} parent=1 // pred_fallthru
      _
    // Predicated region
    $region14: #{tpu_custom_call.1} parent=1 // pred_check
      _
    $region15: #{tpu_custom_call.1} parent=1 // pred_check_branch
      %40 = sbr.rel (0) target = $region17
    $region16: #{tpu_custom_call.1} parent=1 // pred_region
      %s42 = ssub.s32 256, 256
      %43 = vsyncadd [#allocation6], %s42
      %s44 = sshll.u32 [#allocation7], 4
      %s45 = int_to_ptr.vmem [resolvable:$true] %s44
      %50 = dma.hbm_to_vmem [thread:$0]  %s3, 256, %s45, [#allocation6], 64, 64, 4
    $region17: #{tpu_custom_call.1} parent=1 // pred_fallthru
      _
    // Predicated region
    $region18: #{tpu_custom_call.1} parent=1 // pred_check
      _
    $region19: #{tpu_custom_call.1} parent=1 // pred_check_branch
      %52 = sbr.rel (0) target = $region21
    $region20: #{tpu_custom_call.1} parent=1 // pred_region
      _
    $region21: #{tpu_custom_call.1} parent=1 // pred_fallthru
      _
    // Predicated region
    $region22: #{tpu_custom_call.1} parent=1 // pred_check
      _
    $region23: #{tpu_custom_call.1} parent=1 // pred_check_branch
      %54 = sbr.rel (0) target = $region25
    $region24: #{tpu_custom_call.1} parent=1 // pred_region
      %55 = dma.done [#allocation3], 256
    $region25: #{tpu_custom_call.1} parent=1 // pred_fallthru
      _
    // Predicated region
    $region26: #{tpu_custom_call.1} parent=1 // pred_check
      _
    $region27: #{tpu_custom_call.1} parent=1 // pred_check_branch
      %57 = sbr.rel (0) target = $region29
    $region28: #{tpu_custom_call.1} parent=1 // pred_region
      %58 = dma.done [#allocation6], 256
    $region29: #{tpu_custom_call.1} parent=1 // pred_fallthru
      _
    // Predicated region
    $region30: #{tpu_custom_call.1} parent=1 // pred_check
      _
    $region31: #{tpu_custom_call.1} parent=1 // pred_check_branch
      %60 = sbr.rel (0) target = $region33
    $region32: #{tpu_custom_call.1} parent=1 // pred_region
      %61 = dma.done [#allocation6], 256
    $region33: #{tpu_custom_call.1} parent=1 // pred_fallthru
      _
    %v63 = vld [vmem:[#allocation2] sm:$0xff]
    %v64 = vld [vmem:[#allocation2 + $0x8] sm:$0xff]
    %v65 = vpack.c.bf16 %v64, %v63
    %v66 = vld [vmem:[#allocation5] sm:$0xf]
    %v67 = vld [vmem:[#allocation5 + $0x4] sm:$0xf]
    %v68 = vld [vmem:[#allocation5 + $0x8] sm:$0xf]
    %v69 = vld [vmem:[#allocation5 + $0xc] sm:$0xf]
    %v70 = vld [vmem:[%s2] sm:$0x1]
    %v72 = vlaneseq
    %v73 = vshrl.u32 %v72, 7
    %v74 = vsub.s32 0, %v73
    %v75 = vrot.slane %v70, %v74
    %v81 = vunpack.c.l.b16 %v66
    %v82 = vunpack.c.l.b16 %v67
    %v83 = vunpack.c.l.b16 %v68
    %v84 = vunpack.c.l.b16 %v69
    %v85 = vpack.c.b16 %v82, %v81
    %v86 = vpack.c.b16 %v84, %v83
    %vm89 = vcmask 261120
    %v91 = vsel %vm89, %v65, 0
    %93 = vmatprep.subr.bf16.mxu0 0
    %94 = vmatpush1.bf16.msra.mxu0 0
    %95 = vmatprep.subr.bf16.mxu0 0
    %96 = vmatpush1.bf16.msra.mxu0 0
    %97 = vmatprep.subr.bf16.mxu0 0
    %98 = vmatpush1.bf16.msra.mxu0 0
    %99 = vmatprep.subr.bf16.mxu0 0
    %100 = vmatpush1.bf16.msra.mxu0 0
    %101 = vmatprep.subr.bf16.mxu0 0
    %102 = vmatpush1.bf16.msra.mxu0 0
    %103 = vmatprep.subr.bf16.mxu0 0
    %104 = vmatpush1.bf16.msra.mxu0 0
    %105 = vmatprep.subr.bf16.mxu0 0
    %106 = vmatpush1.bf16.msra.mxu0 %v86
    %107 = vmatprep.subr.bf16.mxu0 0
    %108 = vmatpush1.bf16.msra.mxu0 %v85
    %109 = vmatprep.subr.bf16.mxu0 0
    %110 = vmatpush2.bf16.msra.mxu0 0
    %111 = vmatprep.subr.bf16.mxu0 0
    %112 = vmatpush2.bf16.msra.mxu0 0
    %113 = vmatprep.subr.bf16.mxu0 0
    %114 = vmatpush2.bf16.msra.mxu0 0
    %115 = vmatprep.subr.bf16.mxu0 0
    %116 = vmatpush2.bf16.msra.mxu0 0
    %117 = vmatprep.subr.bf16.mxu0 0
    %118 = vmatpush2.bf16.msra.mxu0 0
    %119 = vmatprep.subr.bf16.mxu0 0
    %120 = vmatpush2.bf16.msra.mxu0 0
    %121 = vmatprep.subr.bf16.mxu0 0
    %122 = vmatpush2.bf16.msra.mxu0 0
    %123 = vmatprep.subr.bf16.mxu0 0
    %124 = vmatpush2.bf16.msra.mxu0 0
    %125 = vmatprep.mubr.bf16.mxu0 0
    %126 = vmatmul.mubr.bf16.gmra.mxu0 %v91
    %v127 = vpop.f32.mrf.mxu0
    %v128 = vadd.f32 %v75, %v127
    %v129 = vpop.f32.mrf.mxu0
    %v130 = vpop.f32.mrf.mxu0
    %v131 = vadd.f32 %v75, %v130
    %v132 = vpop.f32.mrf.mxu0
    %133 = vdwg.mxu0
    %136 = vrot.lane.b32.xlu0 %v128, 124
    %v137 = vpop.permute.xlu0 %136
    %138 = vrot.lane.b32.xlu0 %v131, 124
    %v139 = vpop.permute.xlu0 %138
    %142 = vrot.lane.b32.xlu0 %v128, 120
    %v143 = vpop.permute.xlu0 %142
    %144 = vrot.lane.b32.xlu0 %v131, 120
    %v145 = vpop.permute.xlu0 %144
    %148 = vrot.lane.b32.xlu0 %v128, 116
    %v149 = vpop.permute.xlu0 %148
    %150 = vrot.lane.b32.xlu0 %v131, 116
    %v151 = vpop.permute.xlu0 %150
    %154 = vrot.lane.b32.xlu0 %v128, 112
    %v155 = vpop.permute.xlu0 %154
    %156 = vrot.lane.b32.xlu0 %v131, 112
    %v157 = vpop.permute.xlu0 %156
    %160 = vrot.lane.b32.xlu0 %v128, 108
    %v161 = vpop.permute.xlu0 %160
    %162 = vrot.lane.b32.xlu0 %v131, 108
    %v163 = vpop.permute.xlu0 %162
    %166 = vrot.lane.b32.xlu0 %v128, 104
    %v167 = vpop.permute.xlu0 %166
    %168 = vrot.lane.b32.xlu0 %v131, 104
    %v169 = vpop.permute.xlu0 %168
    %172 = vrot.lane.b32.xlu0 %v128, 100
    %v173 = vpop.permute.xlu0 %172
    %174 = vrot.lane.b32.xlu0 %v131, 100
    %v175 = vpop.permute.xlu0 %174
    %v178 = vpack.c.bf16 %v128, %v128
    %v179 = vpack.c.bf16 %v137, %v137
    %v180 = vpack.c.bf16 %v143, %v143
    %v181 = vpack.c.bf16 %v149, %v149
    %v182 = vpack.c.bf16 %v155, %v155
    %v183 = vpack.c.bf16 %v161, %v161
    %v184 = vpack.c.bf16 %v167, %v167
    %v185 = vpack.c.bf16 %v173, %v173
    %v186 = vpack.c.bf16 %v131, %v131
    %v187 = vpack.c.bf16 %v139, %v139
    %v188 = vpack.c.bf16 %v145, %v145
    %v189 = vpack.c.bf16 %v151, %v151
    %v190 = vpack.c.bf16 %v157, %v157
    %v191 = vpack.c.bf16 %v163, %v163
    %v192 = vpack.c.bf16 %v169, %v169
    %v193 = vpack.c.bf16 %v175, %v175
    %195 = vrot.lane.b32.xlu0 %v178, 96
    %v196 = vpop.permute.xlu0 %195
    %vm197 = vcmask 31744
    %v199 = vsel %vm197, %v178, 0
    %v202 = vsel %vm197, %v196, 0
    %204 = vmatprep.subr.bf16.mxu0 0
    %205 = vmatpush1.bf16.xpose.msra.mxu0 0
    %206 = vmatprep.subr.bf16.mxu0 0
    %207 = vmatpush1.bf16.xpose.msra.mxu0 0
    %208 = vmatprep.subr.bf16.mxu0 0
    %209 = vmatpush1.bf16.xpose.msra.mxu0 0
    %210 = vmatprep.subr.bf16.mxu0 0
    %211 = vmatpush1.bf16.xpose.msra.mxu0 0
    %212 = vmatprep.subr.bf16.mxu0 0
    %213 = vmatpush1.bf16.xpose.msra.mxu0 0
    %214 = vmatprep.subr.bf16.mxu0 0
    %215 = vmatpush1.bf16.xpose.msra.mxu0 0
    %216 = vmatprep.subr.bf16.mxu0 0
    %217 = vmatpush1.bf16.xpose.msra.mxu0 0
    %218 = vmatprep.subr.bf16.mxu0 0
    %219 = vmatpush1.bf16.xpose.msra.mxu0 %v202
    %220 = vmatprep.subr.bf16.mxu0 0
    %221 = vmatpush2.bf16.xpose.msra.mxu0 0
    %222 = vmatprep.subr.bf16.mxu0 0
    %223 = vmatpush2.bf16.xpose.msra.mxu0 0
    %224 = vmatprep.subr.bf16.mxu0 0
    %225 = vmatpush2.bf16.xpose.msra.mxu0 0
    %226 = vmatprep.subr.bf16.mxu0 0
    %227 = vmatpush2.bf16.xpose.msra.mxu0 0
    %228 = vmatprep.subr.bf16.mxu0 0
    %229 = vmatpush2.bf16.xpose.msra.mxu0 0
    %230 = vmatprep.subr.bf16.mxu0 0
    %231 = vmatpush2.bf16.xpose.msra.mxu0 0
    %232 = vmatprep.subr.bf16.mxu0 0
    %233 = vmatpush2.bf16.xpose.msra.mxu0 0
    %234 = vmatprep.subr.bf16.mxu0 0
    %235 = vmatpush2.bf16.xpose.msra.mxu0 0
    %236 = vmatprep.mubr.bf16.mxu0 0
    %237 = vmatmul.mubr.bf16.gmra.mxu0 %v199
    %v238 = vpop.f32.mrf.mxu0
    %v239 = vadd.f32 0.0, %v238
    %v240 = vpop.f32.mrf.mxu0
    %v241 = vpop.f32.mrf.mxu0
    %v242 = vpop.f32.mrf.mxu0
    %243 = vdwg.mxu0
    %245 = vrot.lane.b32.xlu0 %v179, 96
    %v246 = vpop.permute.xlu0 %245
    %v248 = vsel %vm197, %v179, 0
    %v251 = vsel %vm197, %v246, 0
    %253 = vmatprep.subr.bf16.mxu0 0
    %254 = vmatpush1.bf16.xpose.msra.mxu0 0
    %255 = vmatprep.subr.bf16.mxu0 0
    %256 = vmatpush1.bf16.xpose.msra.mxu0 0
    %257 = vmatprep.subr.bf16.mxu0 0
    %258 = vmatpush1.bf16.xpose.msra.mxu0 0
    %259 = vmatprep.subr.bf16.mxu0 0
    %260 = vmatpush1.bf16.xpose.msra.mxu0 0
    %261 = vmatprep.subr.bf16.mxu0 0
    %262 = vmatpush1.bf16.xpose.msra.mxu0 0
    %263 = vmatprep.subr.bf16.mxu0 0
    %264 = vmatpush1.bf16.xpose.msra.mxu0 0
    %265 = vmatprep.subr.bf16.mxu0 0
    %266 = vmatpush1.bf16.xpose.msra.mxu0 0
    %267 = vmatprep.subr.bf16.mxu0 0
    %268 = vmatpush1.bf16.xpose.msra.mxu0 %v251
    %269 = vmatprep.subr.bf16.mxu0 0
    %270 = vmatpush2.bf16.xpose.msra.mxu0 0
    %271 = vmatprep.subr.bf16.mxu0 0
    %272 = vmatpush2.bf16.xpose.msra.mxu0 0
    %273 = vmatprep.subr.bf16.mxu0 0
    %274 = vmatpush2.bf16.xpose.msra.mxu0 0
    %275 = vmatprep.subr.bf16.mxu0 0
    %276 = vmatpush2.bf16.xpose.msra.mxu0 0
    %277 = vmatprep.subr.bf16.mxu0 0
    %278 = vmatpush2.bf16.xpose.msra.mxu0 0
    %279 = vmatprep.subr.bf16.mxu0 0
    %280 = vmatpush2.bf16.xpose.msra.mxu0 0
    %281 = vmatprep.subr.bf16.mxu0 0
    %282 = vmatpush2.bf16.xpose.msra.mxu0 0
    %283 = vmatprep.subr.bf16.mxu0 0
    %284 = vmatpush2.bf16.xpose.msra.mxu0 0
    %285 = vmatprep.mubr.bf16.mxu0 0
    %286 = vmatmul.mubr.bf16.gmra.mxu0 %v248
    %v287 = vpop.f32.mrf.mxu0
    %v288 = vadd.f32 0.0, %v287
    %v289 = vpop.f32.mrf.mxu0
    %v290 = vpop.f32.mrf.mxu0
    %v291 = vpop.f32.mrf.mxu0
    %292 = vdwg.mxu0
    %294 = vrot.lane.b32.xlu0 %v180, 96
    %v295 = vpop.permute.xlu0 %294
    %v297 = vsel %vm197, %v180, 0
    %v300 = vsel %vm197, %v295, 0
    %302 = vmatprep.subr.bf16.mxu0 0
    %303 = vmatpush1.bf16.xpose.msra.mxu0 0
    %304 = vmatprep.subr.bf16.mxu0 0
    %305 = vmatpush1.bf16.xpose.msra.mxu0 0
    %306 = vmatprep.subr.bf16.mxu0 0
    %307 = vmatpush1.bf16.xpose.msra.mxu0 0
    %308 = vmatprep.subr.bf16.mxu0 0
    %309 = vmatpush1.bf16.xpose.msra.mxu0 0
    %310 = vmatprep.subr.bf16.mxu0 0
    %311 = vmatpush1.bf16.xpose.msra.mxu0 0
    %312 = vmatprep.subr.bf16.mxu0 0
    %313 = vmatpush1.bf16.xpose.msra.mxu0 0
    %314 = vmatprep.subr.bf16.mxu0 0
    %315 = vmatpush1.bf16.xpose.msra.mxu0 0
    %316 = vmatprep.subr.bf16.mxu0 0
    %317 = vmatpush1.bf16.xpose.msra.mxu0 %v300
    %318 = vmatprep.subr.bf16.mxu0 0
    %319 = vmatpush2.bf16.xpose.msra.mxu0 0
    %320 = vmatprep.subr.bf16.mxu0 0
    %321 = vmatpush2.bf16.xpose.msra.mxu0 0
    %322 = vmatprep.subr.bf16.mxu0 0
    %323 = vmatpush2.bf16.xpose.msra.mxu0 0
    %324 = vmatprep.subr.bf16.mxu0 0
    %325 = vmatpush2.bf16.xpose.msra.mxu0 0
    %326 = vmatprep.subr.bf16.mxu0 0
    %327 = vmatpush2.bf16.xpose.msra.mxu0 0
    %328 = vmatprep.subr.bf16.mxu0 0
    %329 = vmatpush2.bf16.xpose.msra.mxu0 0
    %330 = vmatprep.subr.bf16.mxu0 0
    %331 = vmatpush2.bf16.xpose.msra.mxu0 0
    %332 = vmatprep.subr.bf16.mxu0 0
    %333 = vmatpush2.bf16.xpose.msra.mxu0 0
    %334 = vmatprep.mubr.bf16.mxu0 0
    %335 = vmatmul.mubr.bf16.gmra.mxu0 %v297
    %v336 = vpop.f32.mrf.mxu0
    %v337 = vadd.f32 0.0, %v336
    %v338 = vpop.f32.mrf.mxu0
    %v339 = vpop.f32.mrf.mxu0
    %v340 = vpop.f32.mrf.mxu0
    %341 = vdwg.mxu0
    %343 = vrot.lane.b32.xlu0 %v181, 96
    %v344 = vpop.permute.xlu0 %343
    %v346 = vsel %vm197, %v181, 0
    %v349 = vsel %vm197, %v344, 0
    %351 = vmatprep.subr.bf16.mxu0 0
    %352 = vmatpush1.bf16.xpose.msra.mxu0 0
    %353 = vmatprep.subr.bf16.mxu0 0
    %354 = vmatpush1.bf16.xpose.msra.mxu0 0
    %355 = vmatprep.subr.bf16.mxu0 0
    %356 = vmatpush1.bf16.xpose.msra.mxu0 0
    %357 = vmatprep.subr.bf16.mxu0 0
    %358 = vmatpush1.bf16.xpose.msra.mxu0 0
    %359 = vmatprep.subr.bf16.mxu0 0
    %360 = vmatpush1.bf16.xpose.msra.mxu0 0
    %361 = vmatprep.subr.bf16.mxu0 0
    %362 = vmatpush1.bf16.xpose.msra.mxu0 0
    %363 = vmatprep.subr.bf16.mxu0 0
    %364 = vmatpush1.bf16.xpose.msra.mxu0 0
    %365 = vmatprep.subr.bf16.mxu0 0
    %366 = vmatpush1.bf16.xpose.msra.mxu0 %v349
    %367 = vmatprep.subr.bf16.mxu0 0
    %368 = vmatpush2.bf16.xpose.msra.mxu0 0
    %369 = vmatprep.subr.bf16.mxu0 0
    %370 = vmatpush2.bf16.xpose.msra.mxu0 0
    %371 = vmatprep.subr.bf16.mxu0 0
    %372 = vmatpush2.bf16.xpose.msra.mxu0 0
    %373 = vmatprep.subr.bf16.mxu0 0
    %374 = vmatpush2.bf16.xpose.msra.mxu0 0
    %375 = vmatprep.subr.bf16.mxu0 0
    %376 = vmatpush2.bf16.xpose.msra.mxu0 0
    %377 = vmatprep.subr.bf16.mxu0 0
    %378 = vmatpush2.bf16.xpose.msra.mxu0 0
    %379 = vmatprep.subr.bf16.mxu0 0
    %380 = vmatpush2.bf16.xpose.msra.mxu0 0
    %381 = vmatprep.subr.bf16.mxu0 0
    %382 = vmatpush2.bf16.xpose.msra.mxu0 0
    %383 = vmatprep.mubr.bf16.mxu0 0
    %384 = vmatmul.mubr.bf16.gmra.mxu0 %v346
    %v385 = vpop.f32.mrf.mxu0
    %v386 = vadd.f32 0.0, %v385
    %v387 = vpop.f32.mrf.mxu0
    %v388 = vpop.f32.mrf.mxu0
    %v389 = vpop.f32.mrf.mxu0
    %390 = vdwg.mxu0
    %392 = vrot.lane.b32.xlu0 %v182, 96
    %v393 = vpop.permute.xlu0 %392
    %v395 = vsel %vm197, %v182, 0
    %v398 = vsel %vm197, %v393, 0
    %400 = vmatprep.subr.bf16.mxu0 0
    %401 = vmatpush1.bf16.xpose.msra.mxu0 0
    %402 = vmatprep.subr.bf16.mxu0 0
    %403 = vmatpush1.bf16.xpose.msra.mxu0 0
    %404 = vmatprep.subr.bf16.mxu0 0
    %405 = vmatpush1.bf16.xpose.msra.mxu0 0
    %406 = vmatprep.subr.bf16.mxu0 0
    %407 = vmatpush1.bf16.xpose.msra.mxu0 0
    %408 = vmatprep.subr.bf16.mxu0 0
    %409 = vmatpush1.bf16.xpose.msra.mxu0 0
    %410 = vmatprep.subr.bf16.mxu0 0
    %411 = vmatpush1.bf16.xpose.msra.mxu0 0
    %412 = vmatprep.subr.bf16.mxu0 0
    %413 = vmatpush1.bf16.xpose.msra.mxu0 0
    %414 = vmatprep.subr.bf16.mxu0 0
    %415 = vmatpush1.bf16.xpose.msra.mxu0 %v398
    %416 = vmatprep.subr.bf16.mxu0 0
    %417 = vmatpush2.bf16.xpose.msra.mxu0 0
    %418 = vmatprep.subr.bf16.mxu0 0
    %419 = vmatpush2.bf16.xpose.msra.mxu0 0
    %420 = vmatprep.subr.bf16.mxu0 0
    %421 = vmatpush2.bf16.xpose.msra.mxu0 0
    %422 = vmatprep.subr.bf16.mxu0 0
    %423 = vmatpush2.bf16.xpose.msra.mxu0 0
    %424 = vmatprep.subr.bf16.mxu0 0
    %425 = vmatpush2.bf16.xpose.msra.mxu0 0
    %426 = vmatprep.subr.bf16.mxu0 0
    %427 = vmatpush2.bf16.xpose.msra.mxu0 0
    %428 = vmatprep.subr.bf16.mxu0 0
    %429 = vmatpush2.bf16.xpose.msra.mxu0 0
    %430 = vmatprep.subr.bf16.mxu0 0
    %431 = vmatpush2.bf16.xpose.msra.mxu0 0
    %432 = vmatprep.mubr.bf16.mxu0 0
    %433 = vmatmul.mubr.bf16.gmra.mxu0 %v395
    %v434 = vpop.f32.mrf.mxu0
    %v435 = vadd.f32 0.0, %v434
    %v436 = vpop.f32.mrf.mxu0
    %v437 = vpop.f32.mrf.mxu0
    %v438 = vpop.f32.mrf.mxu0
    %439 = vdwg.mxu0
    %441 = vrot.lane.b32.xlu0 %v183, 96
    %v442 = vpop.permute.xlu0 %441
    %v444 = vsel %vm197, %v183, 0
    %v447 = vsel %vm197, %v442, 0
    %449 = vmatprep.subr.bf16.mxu0 0
    %450 = vmatpush1.bf16.xpose.msra.mxu0 0
    %451 = vmatprep.subr.bf16.mxu0 0
    %452 = vmatpush1.bf16.xpose.msra.mxu0 0
    %453 = vmatprep.subr.bf16.mxu0 0
    %454 = vmatpush1.bf16.xpose.msra.mxu0 0
    %455 = vmatprep.subr.bf16.mxu0 0
    %456 = vmatpush1.bf16.xpose.msra.mxu0 0
    %457 = vmatprep.subr.bf16.mxu0 0
    %458 = vmatpush1.bf16.xpose.msra.mxu0 0
    %459 = vmatprep.subr.bf16.mxu0 0
    %460 = vmatpush1.bf16.xpose.msra.mxu0 0
    %461 = vmatprep.subr.bf16.mxu0 0
    %462 = vmatpush1.bf16.xpose.msra.mxu0 0
    %463 = vmatprep.subr.bf16.mxu0 0
    %464 = vmatpush1.bf16.xpose.msra.mxu0 %v447
    %465 = vmatprep.subr.bf16.mxu0 0
    %466 = vmatpush2.bf16.xpose.msra.mxu0 0
    %467 = vmatprep.subr.bf16.mxu0 0
    %468 = vmatpush2.bf16.xpose.msra.mxu0 0
    %469 = vmatprep.subr.bf16.mxu0 0
    %470 = vmatpush2.bf16.xpose.msra.mxu0 0
    %471 = vmatprep.subr.bf16.mxu0 0
    %472 = vmatpush2.bf16.xpose.msra.mxu0 0
    %473 = vmatprep.subr.bf16.mxu0 0
    %474 = vmatpush2.bf16.xpose.msra.mxu0 0
    %475 = vmatprep.subr.bf16.mxu0 0
    %476 = vmatpush2.bf16.xpose.msra.mxu0 0
    %477 = vmatprep.subr.bf16.mxu0 0
    %478 = vmatpush2.bf16.xpose.msra.mxu0 0
    %479 = vmatprep.subr.bf16.mxu0 0
    %480 = vmatpush2.bf16.xpose.msra.mxu0 0
    %481 = vmatprep.mubr.bf16.mxu0 0
    %482 = vmatmul.mubr.bf16.gmra.mxu0 %v444
    %v483 = vpop.f32.mrf.mxu0
    %v484 = vadd.f32 0.0, %v483
    %v485 = vpop.f32.mrf.mxu0
    %v486 = vpop.f32.mrf.mxu0
    %v487 = vpop.f32.mrf.mxu0
    %488 = vdwg.mxu0
    %490 = vrot.lane.b32.xlu0 %v184, 96
    %v491 = vpop.permute.xlu0 %490
    %v493 = vsel %vm197, %v184, 0
    %v496 = vsel %vm197, %v491, 0
    %498 = vmatprep.subr.bf16.mxu0 0
    %499 = vmatpush1.bf16.xpose.msra.mxu0 0
    %500 = vmatprep.subr.bf16.mxu0 0
    %501 = vmatpush1.bf16.xpose.msra.mxu0 0
    %502 = vmatprep.subr.bf16.mxu0 0
    %503 = vmatpush1.bf16.xpose.msra.mxu0 0
    %504 = vmatprep.subr.bf16.mxu0 0
    %505 = vmatpush1.bf16.xpose.msra.mxu0 0
    %506 = vmatprep.subr.bf16.mxu0 0
    %507 = vmatpush1.bf16.xpose.msra.mxu0 0
    %508 = vmatprep.subr.bf16.mxu0 0
    %509 = vmatpush1.bf16.xpose.msra.mxu0 0
    %510 = vmatprep.subr.bf16.mxu0 0
    %511 = vmatpush1.bf16.xpose.msra.mxu0 0
    %512 = vmatprep.subr.bf16.mxu0 0
    %513 = vmatpush1.bf16.xpose.msra.mxu0 %v496
    %514 = vmatprep.subr.bf16.mxu0 0
    %515 = vmatpush2.bf16.xpose.msra.mxu0 0
    %516 = vmatprep.subr.bf16.mxu0 0
    %517 = vmatpush2.bf16.xpose.msra.mxu0 0
    %518 = vmatprep.subr.bf16.mxu0 0
    %519 = vmatpush2.bf16.xpose.msra.mxu0 0
    %520 = vmatprep.subr.bf16.mxu0 0
    %521 = vmatpush2.bf16.xpose.msra.mxu0 0
    %522 = vmatprep.subr.bf16.mxu0 0
    %523 = vmatpush2.bf16.xpose.msra.mxu0 0
    %524 = vmatprep.subr.bf16.mxu0 0
    %525 = vmatpush2.bf16.xpose.msra.mxu0 0
    %526 = vmatprep.subr.bf16.mxu0 0
    %527 = vmatpush2.bf16.xpose.msra.mxu0 0
    %528 = vmatprep.subr.bf16.mxu0 0
    %529 = vmatpush2.bf16.xpose.msra.mxu0 0
    %530 = vmatprep.mubr.bf16.mxu0 0
    %531 = vmatmul.mubr.bf16.gmra.mxu0 %v493
    %v532 = vpop.f32.mrf.mxu0
    %v533 = vadd.f32 0.0, %v532
    %v534 = vpop.f32.mrf.mxu0
    %v535 = vpop.f32.mrf.mxu0
    %v536 = vpop.f32.mrf.mxu0
    %537 = vdwg.mxu0
    %539 = vrot.lane.b32.xlu0 %v185, 96
    %v540 = vpop.permute.xlu0 %539
    %v542 = vsel %vm197, %v185, 0
    %v545 = vsel %vm197, %v540, 0
    %547 = vmatprep.subr.bf16.mxu0 0
    %548 = vmatpush1.bf16.xpose.msra.mxu0 0
    %549 = vmatprep.subr.bf16.mxu0 0
    %550 = vmatpush1.bf16.xpose.msra.mxu0 0
    %551 = vmatprep.subr.bf16.mxu0 0
    %552 = vmatpush1.bf16.xpose.msra.mxu0 0
    %553 = vmatprep.subr.bf16.mxu0 0
    %554 = vmatpush1.bf16.xpose.msra.mxu0 0
    %555 = vmatprep.subr.bf16.mxu0 0
    %556 = vmatpush1.bf16.xpose.msra.mxu0 0
    %557 = vmatprep.subr.bf16.mxu0 0
    %558 = vmatpush1.bf16.xpose.msra.mxu0 0
    %559 = vmatprep.subr.bf16.mxu0 0
    %560 = vmatpush1.bf16.xpose.msra.mxu0 0
    %561 = vmatprep.subr.bf16.mxu0 0
    %562 = vmatpush1.bf16.xpose.msra.mxu0 %v545
    %563 = vmatprep.subr.bf16.mxu0 0
    %564 = vmatpush2.bf16.xpose.msra.mxu0 0
    %565 = vmatprep.subr.bf16.mxu0 0
    %566 = vmatpush2.bf16.xpose.msra.mxu0 0
    %567 = vmatprep.subr.bf16.mxu0 0
    %568 = vmatpush2.bf16.xpose.msra.mxu0 0
    %569 = vmatprep.subr.bf16.mxu0 0
    %570 = vmatpush2.bf16.xpose.msra.mxu0 0
    %571 = vmatprep.subr.bf16.mxu0 0
    %572 = vmatpush2.bf16.xpose.msra.mxu0 0
    %573 = vmatprep.subr.bf16.mxu0 0
    %574 = vmatpush2.bf16.xpose.msra.mxu0 0
    %575 = vmatprep.subr.bf16.mxu0 0
    %576 = vmatpush2.bf16.xpose.msra.mxu0 0
    %577 = vmatprep.subr.bf16.mxu0 0
    %578 = vmatpush2.bf16.xpose.msra.mxu0 0
    %579 = vmatprep.mubr.bf16.mxu0 0
    %580 = vmatmul.mubr.bf16.gmra.mxu0 %v542
    %v581 = vpop.f32.mrf.mxu0
    %v582 = vadd.f32 0.0, %v581
    %v583 = vpop.f32.mrf.mxu0
    %v584 = vpop.f32.mrf.mxu0
    %v585 = vpop.f32.mrf.mxu0
    %586 = vdwg.mxu0
    %588 = vrot.lane.b32.xlu0 %v186, 96
    %v589 = vpop.permute.xlu0 %588
    %v591 = vsel %vm197, %v186, 0
    %v594 = vsel %vm197, %v589, 0
    %596 = vmatprep.subr.bf16.mxu0 0
    %597 = vmatpush1.bf16.xpose.msra.mxu0 0
    %598 = vmatprep.subr.bf16.mxu0 0
    %599 = vmatpush1.bf16.xpose.msra.mxu0 0
    %600 = vmatprep.subr.bf16.mxu0 0
    %601 = vmatpush1.bf16.xpose.msra.mxu0 0
    %602 = vmatprep.subr.bf16.mxu0 0
    %603 = vmatpush1.bf16.xpose.msra.mxu0 0
    %604 = vmatprep.subr.bf16.mxu0 0
    %605 = vmatpush1.bf16.xpose.msra.mxu0 0
    %606 = vmatprep.subr.bf16.mxu0 0
    %607 = vmatpush1.bf16.xpose.msra.mxu0 0
    %608 = vmatprep.subr.bf16.mxu0 0
    %609 = vmatpush1.bf16.xpose.msra.mxu0 0
    %610 = vmatprep.subr.bf16.mxu0 0
    %611 = vmatpush1.bf16.xpose.msra.mxu0 %v594
    %612 = vmatprep.subr.bf16.mxu0 0
    %613 = vmatpush2.bf16.xpose.msra.mxu0 0
    %614 = vmatprep.subr.bf16.mxu0 0
    %615 = vmatpush2.bf16.xpose.msra.mxu0 0
    %616 = vmatprep.subr.bf16.mxu0 0
    %617 = vmatpush2.bf16.xpose.msra.mxu0 0
    %618 = vmatprep.subr.bf16.mxu0 0
    %619 = vmatpush2.bf16.xpose.msra.mxu0 0
    %620 = vmatprep.subr.bf16.mxu0 0
    %621 = vmatpush2.bf16.xpose.msra.mxu0 0
    %622 = vmatprep.subr.bf16.mxu0 0
    %623 = vmatpush2.bf16.xpose.msra.mxu0 0
    %624 = vmatprep.subr.bf16.mxu0 0
    %625 = vmatpush2.bf16.xpose.msra.mxu0 0
    %626 = vmatprep.subr.bf16.mxu0 0
    %627 = vmatpush2.bf16.xpose.msra.mxu0 0
    %628 = vmatprep.mubr.bf16.mxu0 0
    %629 = vmatmul.mubr.bf16.gmra.mxu0 %v591
    %v630 = vpop.f32.mrf.mxu0
    %v631 = vadd.f32 0.0, %v630
    %v632 = vpop.f32.mrf.mxu0
    %v633 = vpop.f32.mrf.mxu0
    %v634 = vpop.f32.mrf.mxu0
    %635 = vdwg.mxu0
    %637 = vrot.lane.b32.xlu0 %v187, 96
    %v638 = vpop.permute.xlu0 %637
    %v640 = vsel %vm197, %v187, 0
    %v643 = vsel %vm197, %v638, 0
    %645 = vmatprep.subr.bf16.mxu0 0
    %646 = vmatpush1.bf16.xpose.msra.mxu0 0
    %647 = vmatprep.subr.bf16.mxu0 0
    %648 = vmatpush1.bf16.xpose.msra.mxu0 0
    %649 = vmatprep.subr.bf16.mxu0 0
    %650 = vmatpush1.bf16.xpose.msra.mxu0 0
    %651 = vmatprep.subr.bf16.mxu0 0
    %652 = vmatpush1.bf16.xpose.msra.mxu0 0
    %653 = vmatprep.subr.bf16.mxu0 0
    %654 = vmatpush1.bf16.xpose.msra.mxu0 0
    %655 = vmatprep.subr.bf16.mxu0 0
    %656 = vmatpush1.bf16.xpose.msra.mxu0 0
    %657 = vmatprep.subr.bf16.mxu0 0
    %658 = vmatpush1.bf16.xpose.msra.mxu0 0
    %659 = vmatprep.subr.bf16.mxu0 0
    %660 = vmatpush1.bf16.xpose.msra.mxu0 %v643
    %661 = vmatprep.subr.bf16.mxu0 0
    %662 = vmatpush2.bf16.xpose.msra.mxu0 0
    %663 = vmatprep.subr.bf16.mxu0 0
    %664 = vmatpush2.bf16.xpose.msra.mxu0 0
    %665 = vmatprep.subr.bf16.mxu0 0
    %666 = vmatpush2.bf16.xpose.msra.mxu0 0
    %667 = vmatprep.subr.bf16.mxu0 0
    %668 = vmatpush2.bf16.xpose.msra.mxu0 0
    %669 = vmatprep.subr.bf16.mxu0 0
    %670 = vmatpush2.bf16.xpose.msra.mxu0 0
    %671 = vmatprep.subr.bf16.mxu0 0
    %672 = vmatpush2.bf16.xpose.msra.mxu0 0
    %673 = vmatprep.subr.bf16.mxu0 0
    %674 = vmatpush2.bf16.xpose.msra.mxu0 0
    %675 = vmatprep.subr.bf16.mxu0 0
    %676 = vmatpush2.bf16.xpose.msra.mxu0 0
    %677 = vmatprep.mubr.bf16.mxu0 0
    %678 = vmatmul.mubr.bf16.gmra.mxu0 %v640
    %v679 = vpop.f32.mrf.mxu0
    %v680 = vadd.f32 0.0, %v679
    %v681 = vpop.f32.mrf.mxu0
    %v682 = vpop.f32.mrf.mxu0
    %v683 = vpop.f32.mrf.mxu0
    %684 = vdwg.mxu0
    %686 = vrot.lane.b32.xlu0 %v188, 96
    %v687 = vpop.permute.xlu0 %686
    %v689 = vsel %vm197, %v188, 0
    %v692 = vsel %vm197, %v687, 0
    %694 = vmatprep.subr.bf16.mxu0 0
    %695 = vmatpush1.bf16.xpose.msra.mxu0 0
    %696 = vmatprep.subr.bf16.mxu0 0
    %697 = vmatpush1.bf16.xpose.msra.mxu0 0
    %698 = vmatprep.subr.bf16.mxu0 0
    %699 = vmatpush1.bf16.xpose.msra.mxu0 0
    %700 = vmatprep.subr.bf16.mxu0 0
    %701 = vmatpush1.bf16.xpose.msra.mxu0 0
    %702 = vmatprep.subr.bf16.mxu0 0
    %703 = vmatpush1.bf16.xpose.msra.mxu0 0
    %704 = vmatprep.subr.bf16.mxu0 0
    %705 = vmatpush1.bf16.xpose.msra.mxu0 0
    %706 = vmatprep.subr.bf16.mxu0 0
    %707 = vmatpush1.bf16.xpose.msra.mxu0 0
    %708 = vmatprep.subr.bf16.mxu0 0
    %709 = vmatpush1.bf16.xpose.msra.mxu0 %v692
    %710 = vmatprep.subr.bf16.mxu0 0
    %711 = vmatpush2.bf16.xpose.msra.mxu0 0
    %712 = vmatprep.subr.bf16.mxu0 0
    %713 = vmatpush2.bf16.xpose.msra.mxu0 0
    %714 = vmatprep.subr.bf16.mxu0 0
    %715 = vmatpush2.bf16.xpose.msra.mxu0 0
    %716 = vmatprep.subr.bf16.mxu0 0
    %717 = vmatpush2.bf16.xpose.msra.mxu0 0
    %718 = vmatprep.subr.bf16.mxu0 0
    %719 = vmatpush2.bf16.xpose.msra.mxu0 0
    %720 = vmatprep.subr.bf16.mxu0 0
    %721 = vmatpush2.bf16.xpose.msra.mxu0 0
    %722 = vmatprep.subr.bf16.mxu0 0
    %723 = vmatpush2.bf16.xpose.msra.mxu0 0
    %724 = vmatprep.subr.bf16.mxu0 0
    %725 = vmatpush2.bf16.xpose.msra.mxu0 0
    %726 = vmatprep.mubr.bf16.mxu0 0
    %727 = vmatmul.mubr.bf16.gmra.mxu0 %v689
    %v728 = vpop.f32.mrf.mxu0
    %v729 = vadd.f32 0.0, %v728
    %v730 = vpop.f32.mrf.mxu0
    %v731 = vpop.f32.mrf.mxu0
    %v732 = vpop.f32.mrf.mxu0
    %733 = vdwg.mxu0
    %735 = vrot.lane.b32.xlu0 %v189, 96
    %v736 = vpop.permute.xlu0 %735
    %v738 = vsel %vm197, %v189, 0
    %v741 = vsel %vm197, %v736, 0
    %743 = vmatprep.subr.bf16.mxu0 0
    %744 = vmatpush1.bf16.xpose.msra.mxu0 0
    %745 = vmatprep.subr.bf16.mxu0 0
    %746 = vmatpush1.bf16.xpose.msra.mxu0 0
    %747 = vmatprep.subr.bf16.mxu0 0
    %748 = vmatpush1.bf16.xpose.msra.mxu0 0
    %749 = vmatprep.subr.bf16.mxu0 0
    %750 = vmatpush1.bf16.xpose.msra.mxu0 0
    %751 = vmatprep.subr.bf16.mxu0 0
    %752 = vmatpush1.bf16.xpose.msra.mxu0 0
    %753 = vmatprep.subr.bf16.mxu0 0
    %754 = vmatpush1.bf16.xpose.msra.mxu0 0
    %755 = vmatprep.subr.bf16.mxu0 0
    %756 = vmatpush1.bf16.xpose.msra.mxu0 0
    %757 = vmatprep.subr.bf16.mxu0 0
    %758 = vmatpush1.bf16.xpose.msra.mxu0 %v741
    %759 = vmatprep.subr.bf16.mxu0 0
    %760 = vmatpush2.bf16.xpose.msra.mxu0 0
    %761 = vmatprep.subr.bf16.mxu0 0
    %762 = vmatpush2.bf16.xpose.msra.mxu0 0
    %763 = vmatprep.subr.bf16.mxu0 0
    %764 = vmatpush2.bf16.xpose.msra.mxu0 0
    %765 = vmatprep.subr.bf16.mxu0 0
    %766 = vmatpush2.bf16.xpose.msra.mxu0 0
    %767 = vmatprep.subr.bf16.mxu0 0
    %768 = vmatpush2.bf16.xpose.msra.mxu0 0
    %769 = vmatprep.subr.bf16.mxu0 0
    %770 = vmatpush2.bf16.xpose.msra.mxu0 0
    %771 = vmatprep.subr.bf16.mxu0 0
    %772 = vmatpush2.bf16.xpose.msra.mxu0 0
    %773 = vmatprep.subr.bf16.mxu0 0
    %774 = vmatpush2.bf16.xpose.msra.mxu0 0
    %775 = vmatprep.mubr.bf16.mxu0 0
    %776 = vmatmul.mubr.bf16.gmra.mxu0 %v738
    %v777 = vpop.f32.mrf.mxu0
    %v778 = vadd.f32 0.0, %v777
    %v779 = vpop.f32.mrf.mxu0
    %v780 = vpop.f32.mrf.mxu0
    %v781 = vpop.f32.mrf.mxu0
    %782 = vdwg.mxu0
    %784 = vrot.lane.b32.xlu0 %v190, 96
    %v785 = vpop.permute.xlu0 %784
    %v787 = vsel %vm197, %v190, 0
    %v790 = vsel %vm197, %v785, 0
    %792 = vmatprep.subr.bf16.mxu0 0
    %793 = vmatpush1.bf16.xpose.msra.mxu0 0
    %794 = vmatprep.subr.bf16.mxu0 0
    %795 = vmatpush1.bf16.xpose.msra.mxu0 0
    %796 = vmatprep.subr.bf16.mxu0 0
    %797 = vmatpush1.bf16.xpose.msra.mxu0 0
    %798 = vmatprep.subr.bf16.mxu0 0
    %799 = vmatpush1.bf16.xpose.msra.mxu0 0
    %800 = vmatprep.subr.bf16.mxu0 0
    %801 = vmatpush1.bf16.xpose.msra.mxu0 0
    %802 = vmatprep.subr.bf16.mxu0 0
    %803 = vmatpush1.bf16.xpose.msra.mxu0 0
    %804 = vmatprep.subr.bf16.mxu0 0
    %805 = vmatpush1.bf16.xpose.msra.mxu0 0
    %806 = vmatprep.subr.bf16.mxu0 0
    %807 = vmatpush1.bf16.xpose.msra.mxu0 %v790
    %808 = vmatprep.subr.bf16.mxu0 0
    %809 = vmatpush2.bf16.xpose.msra.mxu0 0
    %810 = vmatprep.subr.bf16.mxu0 0
    %811 = vmatpush2.bf16.xpose.msra.mxu0 0
    %812 = vmatprep.subr.bf16.mxu0 0
    %813 = vmatpush2.bf16.xpose.msra.mxu0 0
    %814 = vmatprep.subr.bf16.mxu0 0
    %815 = vmatpush2.bf16.xpose.msra.mxu0 0
    %816 = vmatprep.subr.bf16.mxu0 0
    %817 = vmatpush2.bf16.xpose.msra.mxu0 0
    %818 = vmatprep.subr.bf16.mxu0 0
    %819 = vmatpush2.bf16.xpose.msra.mxu0 0
    %820 = vmatprep.subr.bf16.mxu0 0
    %821 = vmatpush2.bf16.xpose.msra.mxu0 0
    %822 = vmatprep.subr.bf16.mxu0 0
    %823 = vmatpush2.bf16.xpose.msra.mxu0 0
    %824 = vmatprep.mubr.bf16.mxu0 0
    %825 = vmatmul.mubr.bf16.gmra.mxu0 %v787
    %v826 = vpop.f32.mrf.mxu0
    %v827 = vadd.f32 0.0, %v826
    %v828 = vpop.f32.mrf.mxu0
    %v829 = vpop.f32.mrf.mxu0
    %v830 = vpop.f32.mrf.mxu0
    %831 = vdwg.mxu0
    %833 = vrot.lane.b32.xlu0 %v191, 96
    %v834 = vpop.permute.xlu0 %833
    %v836 = vsel %vm197, %v191, 0
    %v839 = vsel %vm197, %v834, 0
    %841 = vmatprep.subr.bf16.mxu0 0
    %842 = vmatpush1.bf16.xpose.msra.mxu0 0
    %843 = vmatprep.subr.bf16.mxu0 0
    %844 = vmatpush1.bf16.xpose.msra.mxu0 0
    %845 = vmatprep.subr.bf16.mxu0 0
    %846 = vmatpush1.bf16.xpose.msra.mxu0 0
    %847 = vmatprep.subr.bf16.mxu0 0
    %848 = vmatpush1.bf16.xpose.msra.mxu0 0
    %849 = vmatprep.subr.bf16.mxu0 0
    %850 = vmatpush1.bf16.xpose.msra.mxu0 0
    %851 = vmatprep.subr.bf16.mxu0 0
    %852 = vmatpush1.bf16.xpose.msra.mxu0 0
    %853 = vmatprep.subr.bf16.mxu0 0
    %854 = vmatpush1.bf16.xpose.msra.mxu0 0
    %855 = vmatprep.subr.bf16.mxu0 0
    %856 = vmatpush1.bf16.xpose.msra.mxu0 %v839
    %857 = vmatprep.subr.bf16.mxu0 0
    %858 = vmatpush2.bf16.xpose.msra.mxu0 0
    %859 = vmatprep.subr.bf16.mxu0 0
    %860 = vmatpush2.bf16.xpose.msra.mxu0 0
    %861 = vmatprep.subr.bf16.mxu0 0
    %862 = vmatpush2.bf16.xpose.msra.mxu0 0
    %863 = vmatprep.subr.bf16.mxu0 0
    %864 = vmatpush2.bf16.xpose.msra.mxu0 0
    %865 = vmatprep.subr.bf16.mxu0 0
    %866 = vmatpush2.bf16.xpose.msra.mxu0 0
    %867 = vmatprep.subr.bf16.mxu0 0
    %868 = vmatpush2.bf16.xpose.msra.mxu0 0
    %869 = vmatprep.subr.bf16.mxu0 0
    %870 = vmatpush2.bf16.xpose.msra.mxu0 0
    %871 = vmatprep.subr.bf16.mxu0 0
    %872 = vmatpush2.bf16.xpose.msra.mxu0 0
    %873 = vmatprep.mubr.bf16.mxu0 0
    %874 = vmatmul.mubr.bf16.gmra.mxu0 %v836
    %v875 = vpop.f32.mrf.mxu0
    %v876 = vadd.f32 0.0, %v875
    %v877 = vpop.f32.mrf.mxu0
    %v878 = vpop.f32.mrf.mxu0
    %v879 = vpop.f32.mrf.mxu0
    %880 = vdwg.mxu0
    %882 = vrot.lane.b32.xlu0 %v192, 96
    %v883 = vpop.permute.xlu0 %882
    %v885 = vsel %vm197, %v192, 0
    %v888 = vsel %vm197, %v883, 0
    %890 = vmatprep.subr.bf16.mxu0 0
    %891 = vmatpush1.bf16.xpose.msra.mxu0 0
    %892 = vmatprep.subr.bf16.mxu0 0
    %893 = vmatpush1.bf16.xpose.msra.mxu0 0
    %894 = vmatprep.subr.bf16.mxu0 0
    %895 = vmatpush1.bf16.xpose.msra.mxu0 0
    %896 = vmatprep.subr.bf16.mxu0 0
    %897 = vmatpush1.bf16.xpose.msra.mxu0 0
    %898 = vmatprep.subr.bf16.mxu0 0
    %899 = vmatpush1.bf16.xpose.msra.mxu0 0
    %900 = vmatprep.subr.bf16.mxu0 0
    %901 = vmatpush1.bf16.xpose.msra.mxu0 0
    %902 = vmatprep.subr.bf16.mxu0 0
    %903 = vmatpush1.bf16.xpose.msra.mxu0 0
    %904 = vmatprep.subr.bf16.mxu0 0
    %905 = vmatpush1.bf16.xpose.msra.mxu0 %v888
    %906 = vmatprep.subr.bf16.mxu0 0
    %907 = vmatpush2.bf16.xpose.msra.mxu0 0
    %908 = vmatprep.subr.bf16.mxu0 0
    %909 = vmatpush2.bf16.xpose.msra.mxu0 0
    %910 = vmatprep.subr.bf16.mxu0 0
    %911 = vmatpush2.bf16.xpose.msra.mxu0 0
    %912 = vmatprep.subr.bf16.mxu0 0
    %913 = vmatpush2.bf16.xpose.msra.mxu0 0
    %914 = vmatprep.subr.bf16.mxu0 0
    %915 = vmatpush2.bf16.xpose.msra.mxu0 0
    %916 = vmatprep.subr.bf16.mxu0 0
    %917 = vmatpush2.bf16.xpose.msra.mxu0 0
    %918 = vmatprep.subr.bf16.mxu0 0
    %919 = vmatpush2.bf16.xpose.msra.mxu0 0
    %920 = vmatprep.subr.bf16.mxu0 0
    %921 = vmatpush2.bf16.xpose.msra.mxu0 0
    %922 = vmatprep.mubr.bf16.mxu0 0
    %923 = vmatmul.mubr.bf16.gmra.mxu0 %v885
    %v924 = vpop.f32.mrf.mxu0
    %v925 = vadd.f32 0.0, %v924
    %v926 = vpop.f32.mrf.mxu0
    %v927 = vpop.f32.mrf.mxu0
    %v928 = vpop.f32.mrf.mxu0
    %929 = vdwg.mxu0
    %931 = vrot.lane.b32.xlu0 %v193, 96
    %v932 = vpop.permute.xlu0 %931
    %v934 = vsel %vm197, %v193, 0
    %v937 = vsel %vm197, %v932, 0
    %939 = vmatprep.subr.bf16.mxu0 0
    %940 = vmatpush1.bf16.xpose.msra.mxu0 0
    %941 = vmatprep.subr.bf16.mxu0 0
    %942 = vmatpush1.bf16.xpose.msra.mxu0 0
    %943 = vmatprep.subr.bf16.mxu0 0
    %944 = vmatpush1.bf16.xpose.msra.mxu0 0
    %945 = vmatprep.subr.bf16.mxu0 0
    %946 = vmatpush1.bf16.xpose.msra.mxu0 0
    %947 = vmatprep.subr.bf16.mxu0 0
    %948 = vmatpush1.bf16.xpose.msra.mxu0 0
    %949 = vmatprep.subr.bf16.mxu0 0
    %950 = vmatpush1.bf16.xpose.msra.mxu0 0
    %951 = vmatprep.subr.bf16.mxu0 0
    %952 = vmatpush1.bf16.xpose.msra.mxu0 0
    %953 = vmatprep.subr.bf16.mxu0 0
    %954 = vmatpush1.bf16.xpose.msra.mxu0 %v937
    %955 = vmatprep.subr.bf16.mxu0 0
    %956 = vmatpush2.bf16.xpose.msra.mxu0 0
    %957 = vmatprep.subr.bf16.mxu0 0
    %958 = vmatpush2.bf16.xpose.msra.mxu0 0
    %959 = vmatprep.subr.bf16.mxu0 0
    %960 = vmatpush2.bf16.xpose.msra.mxu0 0
    %961 = vmatprep.subr.bf16.mxu0 0
    %962 = vmatpush2.bf16.xpose.msra.mxu0 0
    %963 = vmatprep.subr.bf16.mxu0 0
    %964 = vmatpush2.bf16.xpose.msra.mxu0 0
    %965 = vmatprep.subr.bf16.mxu0 0
    %966 = vmatpush2.bf16.xpose.msra.mxu0 0
    %967 = vmatprep.subr.bf16.mxu0 0
    %968 = vmatpush2.bf16.xpose.msra.mxu0 0
    %969 = vmatprep.subr.bf16.mxu0 0
    %970 = vmatpush2.bf16.xpose.msra.mxu0 0
    %971 = vmatprep.mubr.bf16.mxu0 0
    %972 = vmatmul.mubr.bf16.gmra.mxu0 %v934
    %v973 = vpop.f32.mrf.mxu0
    %v974 = vadd.f32 0.0, %v973
    %v975 = vpop.f32.mrf.mxu0
    %v976 = vpop.f32.mrf.mxu0
    %v977 = vpop.f32.mrf.mxu0
    %978 = vdwg.mxu0
    %vm979 = vcmask 64512
    %v980 = vsel %vm979, %v239, -inf
    %981 = vmax.xlane.f32.xlu0 %v980
    %v982 = vpop.xlane.xlu0 %981
    %v983 = vsel %vm979, %v288, -inf
    %984 = vmax.xlane.f32.xlu0 %v983
    %v985 = vpop.xlane.xlu0 %984
    %v986 = vsel %vm979, %v337, -inf
    %987 = vmax.xlane.f32.xlu0 %v986
    %v988 = vpop.xlane.xlu0 %987
    %v989 = vsel %vm979, %v386, -inf
    %990 = vmax.xlane.f32.xlu0 %v989
    %v991 = vpop.xlane.xlu0 %990
    %v992 = vsel %vm979, %v435, -inf
    %993 = vmax.xlane.f32.xlu0 %v992
    %v994 = vpop.xlane.xlu0 %993
    %v995 = vsel %vm979, %v484, -inf
    %996 = vmax.xlane.f32.xlu0 %v995
    %v997 = vpop.xlane.xlu0 %996
    %v998 = vsel %vm979, %v533, -inf
    %999 = vmax.xlane.f32.xlu0 %v998
    %v1000 = vpop.xlane.xlu0 %999
    %v1001 = vsel %vm979, %v582, -inf
    %1002 = vmax.xlane.f32.xlu0 %v1001
    %v1003 = vpop.xlane.xlu0 %1002
    %v1004 = vsel %vm979, %v631, -inf
    %1005 = vmax.xlane.f32.xlu0 %v1004
    %v1006 = vpop.xlane.xlu0 %1005
    %v1007 = vsel %vm979, %v680, -inf
    %1008 = vmax.xlane.f32.xlu0 %v1007
    %v1009 = vpop.xlane.xlu0 %1008
    %v1010 = vsel %vm979, %v729, -inf
    %1011 = vmax.xlane.f32.xlu0 %v1010
    %v1012 = vpop.xlane.xlu0 %1011
    %v1013 = vsel %vm979, %v778, -inf
    %1014 = vmax.xlane.f32.xlu0 %v1013
    %v1015 = vpop.xlane.xlu0 %1014
    %v1016 = vsel %vm979, %v827, -inf
    %1017 = vmax.xlane.f32.xlu0 %v1016
    %v1018 = vpop.xlane.xlu0 %1017
    %v1019 = vsel %vm979, %v876, -inf
    %1020 = vmax.xlane.f32.xlu0 %v1019
    %v1021 = vpop.xlane.xlu0 %1020
    %v1022 = vsel %vm979, %v925, -inf
    %1023 = vmax.xlane.f32.xlu0 %v1022
    %v1024 = vpop.xlane.xlu0 %1023
    %v1025 = vsel %vm979, %v974, -inf
    %1026 = vmax.xlane.f32.xlu0 %v1025
    %v1027 = vpop.xlane.xlu0 %1026
    %v1028 = vsub.f32 %v239, %v982
    %v1029 = vsub.f32 %v288, %v985
    %v1030 = vsub.f32 %v337, %v988
    %v1031 = vsub.f32 %v386, %v991
    %v1032 = vsub.f32 %v435, %v994
    %v1033 = vsub.f32 %v484, %v997
    %v1034 = vsub.f32 %v533, %v1000
    %v1035 = vsub.f32 %v582, %v1003
    %v1036 = vsub.f32 %v631, %v1006
    %v1037 = vsub.f32 %v680, %v1009
    %v1038 = vsub.f32 %v729, %v1012
    %v1039 = vsub.f32 %v778, %v1015
    %v1040 = vsub.f32 %v827, %v1018
    %v1041 = vsub.f32 %v876, %v1021
    %v1042 = vsub.f32 %v925, %v1024
    %v1043 = vsub.f32 %v974, %v1027
    %v1044 = vmul.f32 %v1028, 1.442695
    %v1045 = vpow.pop %v1044
    %v1046 = vmul.f32 %v1029, 1.442695
    %v1047 = vpow.pop %v1046
    %v1048 = vmul.f32 %v1030, 1.442695
    %v1049 = vpow.pop %v1048
    %v1050 = vmul.f32 %v1031, 1.442695
    %v1051 = vpow.pop %v1050
    %v1052 = vmul.f32 %v1032, 1.442695
    %v1053 = vpow.pop %v1052
    %v1054 = vmul.f32 %v1033, 1.442695
    %v1055 = vpow.pop %v1054
    %v1056 = vmul.f32 %v1034, 1.442695
    %v1057 = vpow.pop %v1056
    %v1058 = vmul.f32 %v1035, 1.442695
    %v1059 = vpow.pop %v1058
    %v1060 = vmul.f32 %v1036, 1.442695
    %v1061 = vpow.pop %v1060
    %v1062 = vmul.f32 %v1037, 1.442695
    %v1063 = vpow.pop %v1062
    %v1064 = vmul.f32 %v1038, 1.442695
    %v1065 = vpow.pop %v1064
    %v1066 = vmul.f32 %v1039, 1.442695
    %v1067 = vpow.pop %v1066
    %v1068 = vmul.f32 %v1040, 1.442695
    %v1069 = vpow.pop %v1068
    %v1070 = vmul.f32 %v1041, 1.442695
    %v1071 = vpow.pop %v1070
    %v1072 = vmul.f32 %v1042, 1.442695
    %v1073 = vpow.pop %v1072
    %v1074 = vmul.f32 %v1043, 1.442695
    %v1075 = vpow.pop %v1074
    %v1076 = vsel %vm979, %v1045, 0.0
    %1077 = vadd.xlane.f32.xlu0 %v1076
    %v1078 = vpop.xlane.xlu0 %1077
    %v1079 = vsel %vm979, %v1047, 0.0
    %1080 = vadd.xlane.f32.xlu0 %v1079
    %v1081 = vpop.xlane.xlu0 %1080
    %v1082 = vsel %vm979, %v1049, 0.0
    %1083 = vadd.xlane.f32.xlu0 %v1082
    %v1084 = vpop.xlane.xlu0 %1083
    %v1085 = vsel %vm979, %v1051, 0.0
    %1086 = vadd.xlane.f32.xlu0 %v1085
    %v1087 = vpop.xlane.xlu0 %1086
    %v1088 = vsel %vm979, %v1053, 0.0
    %1089 = vadd.xlane.f32.xlu0 %v1088
    %v1090 = vpop.xlane.xlu0 %1089
    %v1091 = vsel %vm979, %v1055, 0.0
    %1092 = vadd.xlane.f32.xlu0 %v1091
    %v1093 = vpop.xlane.xlu0 %1092
    %v1094 = vsel %vm979, %v1057, 0.0
    %1095 = vadd.xlane.f32.xlu0 %v1094
    %v1096 = vpop.xlane.xlu0 %1095
    %v1097 = vsel %vm979, %v1059, 0.0
    %1098 = vadd.xlane.f32.xlu0 %v1097
    %v1099 = vpop.xlane.xlu0 %1098
    %v1100 = vsel %vm979, %v1061, 0.0
    %1101 = vadd.xlane.f32.xlu0 %v1100
    %v1102 = vpop.xlane.xlu0 %1101
    %v1103 = vsel %vm979, %v1063, 0.0
    %1104 = vadd.xlane.f32.xlu0 %v1103
    %v1105 = vpop.xlane.xlu0 %1104
    %v1106 = vsel %vm979, %v1065, 0.0
    %1107 = vadd.xlane.f32.xlu0 %v1106
    %v1108 = vpop.xlane.xlu0 %1107
    %v1109 = vsel %vm979, %v1067, 0.0
    %1110 = vadd.xlane.f32.xlu0 %v1109
    %v1111 = vpop.xlane.xlu0 %1110
    %v1112 = vsel %vm979, %v1069, 0.0
    %1113 = vadd.xlane.f32.xlu0 %v1112
    %v1114 = vpop.xlane.xlu0 %1113
    %v1115 = vsel %vm979, %v1071, 0.0
    %1116 = vadd.xlane.f32.xlu0 %v1115
    %v1117 = vpop.xlane.xlu0 %1116
    %v1118 = vsel %vm979, %v1073, 0.0
    %1119 = vadd.xlane.f32.xlu0 %v1118
    %v1120 = vpop.xlane.xlu0 %1119
    %v1121 = vsel %vm979, %v1075, 0.0
    %1122 = vadd.xlane.f32.xlu0 %v1121
    %v1123 = vpop.xlane.xlu0 %1122
    %v1124 = vpack.c.bf16 %v1045, %v1045
    %v1125 = vpack.c.bf16 %v1047, %v1047
    %v1126 = vpack.c.bf16 %v1049, %v1049
    %v1127 = vpack.c.bf16 %v1051, %v1051
    %v1128 = vpack.c.bf16 %v1053, %v1053
    %v1129 = vpack.c.bf16 %v1055, %v1055
    %v1130 = vpack.c.bf16 %v1057, %v1057
    %v1131 = vpack.c.bf16 %v1059, %v1059
    %v1132 = vpack.c.bf16 %v1061, %v1061
    %v1133 = vpack.c.bf16 %v1063, %v1063
    %v1134 = vpack.c.bf16 %v1065, %v1065
    %v1135 = vpack.c.bf16 %v1067, %v1067
    %v1136 = vpack.c.bf16 %v1069, %v1069
    %v1137 = vpack.c.bf16 %v1071, %v1071
    %v1138 = vpack.c.bf16 %v1073, %v1073
    %v1139 = vpack.c.bf16 %v1075, %v1075
    %1140 = vrot.lane.b32.xlu0 %v178, 64
    %v1141 = vpop.permute.xlu0 %1140
    %v1143 = vsel %vm979, %v1124, 0
    %vm1145 = vcmask 1043456
    %v1147 = vsel %vm1145, %v1141, 0
    %1149 = vmatprep.subr.bf16.mxu0 0
    %1150 = vmatpush1.bf16.msra.mxu0 0
    %1151 = vmatprep.subr.bf16.mxu0 0
    %1152 = vmatpush1.bf16.msra.mxu0 0
    %1153 = vmatprep.subr.bf16.mxu0 0
    %1154 = vmatpush1.bf16.msra.mxu0 0
    %1155 = vmatprep.subr.bf16.mxu0 0
    %1156 = vmatpush1.bf16.msra.mxu0 0
    %1157 = vmatprep.subr.bf16.mxu0 0
    %1158 = vmatpush1.bf16.msra.mxu0 0
    %1159 = vmatprep.subr.bf16.mxu0 0
    %1160 = vmatpush1.bf16.msra.mxu0 0
    %1161 = vmatprep.subr.bf16.mxu0 0
    %1162 = vmatpush1.bf16.msra.mxu0 0
    %1163 = vmatprep.subr.bf16.mxu0 0
    %1164 = vmatpush1.bf16.msra.mxu0 %v1147
    %1165 = vmatprep.subr.bf16.mxu0 0
    %1166 = vmatpush2.bf16.msra.mxu0 0
    %1167 = vmatprep.subr.bf16.mxu0 0
    %1168 = vmatpush2.bf16.msra.mxu0 0
    %1169 = vmatprep.subr.bf16.mxu0 0
    %1170 = vmatpush2.bf16.msra.mxu0 0
    %1171 = vmatprep.subr.bf16.mxu0 0
    %1172 = vmatpush2.bf16.msra.mxu0 0
    %1173 = vmatprep.subr.bf16.mxu0 0
    %1174 = vmatpush2.bf16.msra.mxu0 0
    %1175 = vmatprep.subr.bf16.mxu0 0
    %1176 = vmatpush2.bf16.msra.mxu0 0
    %1177 = vmatprep.subr.bf16.mxu0 0
    %1178 = vmatpush2.bf16.msra.mxu0 0
    %1179 = vmatprep.subr.bf16.mxu0 0
    %1180 = vmatpush2.bf16.msra.mxu0 0
    %1181 = vmatprep.mubr.bf16.mxu0 0
    %1182 = vmatmul.mubr.bf16.gmra.mxu0 %v1143
    %v1183 = vpop.f32.mrf.mxu0
    %v1184 = vadd.f32 0.0, %v1183
    %v1185 = vpop.f32.mrf.mxu0
    %v1186 = vpop.f32.mrf.mxu0
    %v1187 = vpop.f32.mrf.mxu0
    %1188 = vdwg.mxu0
    %1189 = vrot.lane.b32.xlu0 %v179, 64
    %v1190 = vpop.permute.xlu0 %1189
    %v1192 = vsel %vm979, %v1125, 0
    %v1195 = vsel %vm1145, %v1190, 0
    %1197 = vmatprep.subr.bf16.mxu0 0
    %1198 = vmatpush1.bf16.msra.mxu0 0
    %1199 = vmatprep.subr.bf16.mxu0 0
    %1200 = vmatpush1.bf16.msra.mxu0 0
    %1201 = vmatprep.subr.bf16.mxu0 0
    %1202 = vmatpush1.bf16.msra.mxu0 0
    %1203 = vmatprep.subr.bf16.mxu0 0
    %1204 = vmatpush1.bf16.msra.mxu0 0
    %1205 = vmatprep.subr.bf16.mxu0 0
    %1206 = vmatpush1.bf16.msra.mxu0 0
    %1207 = vmatprep.subr.bf16.mxu0 0
    %1208 = vmatpush1.bf16.msra.mxu0 0
    %1209 = vmatprep.subr.bf16.mxu0 0
    %1210 = vmatpush1.bf16.msra.mxu0 0
    %1211 = vmatprep.subr.bf16.mxu0 0
    %1212 = vmatpush1.bf16.msra.mxu0 %v1195
    %1213 = vmatprep.subr.bf16.mxu0 0
    %1214 = vmatpush2.bf16.msra.mxu0 0
    %1215 = vmatprep.subr.bf16.mxu0 0
    %1216 = vmatpush2.bf16.msra.mxu0 0
    %1217 = vmatprep.subr.bf16.mxu0 0
    %1218 = vmatpush2.bf16.msra.mxu0 0
    %1219 = vmatprep.subr.bf16.mxu0 0
    %1220 = vmatpush2.bf16.msra.mxu0 0
    %1221 = vmatprep.subr.bf16.mxu0 0
    %1222 = vmatpush2.bf16.msra.mxu0 0
    %1223 = vmatprep.subr.bf16.mxu0 0
    %1224 = vmatpush2.bf16.msra.mxu0 0
    %1225 = vmatprep.subr.bf16.mxu0 0
    %1226 = vmatpush2.bf16.msra.mxu0 0
    %1227 = vmatprep.subr.bf16.mxu0 0
    %1228 = vmatpush2.bf16.msra.mxu0 0
    %1229 = vmatprep.mubr.bf16.mxu0 0
    %1230 = vmatmul.mubr.bf16.gmra.mxu0 %v1192
    %v1231 = vpop.f32.mrf.mxu0
    %v1232 = vadd.f32 0.0, %v1231
    %v1233 = vpop.f32.mrf.mxu0
    %v1234 = vpop.f32.mrf.mxu0
    %v1235 = vpop.f32.mrf.mxu0
    %1236 = vdwg.mxu0
    %1237 = vrot.lane.b32.xlu0 %v180, 64
    %v1238 = vpop.permute.xlu0 %1237
    %v1240 = vsel %vm979, %v1126, 0
    %v1243 = vsel %vm1145, %v1238, 0
    %1245 = vmatprep.subr.bf16.mxu0 0
    %1246 = vmatpush1.bf16.msra.mxu0 0
    %1247 = vmatprep.subr.bf16.mxu0 0
    %1248 = vmatpush1.bf16.msra.mxu0 0
    %1249 = vmatprep.subr.bf16.mxu0 0
    %1250 = vmatpush1.bf16.msra.mxu0 0
    %1251 = vmatprep.subr.bf16.mxu0 0
    %1252 = vmatpush1.bf16.msra.mxu0 0
    %1253 = vmatprep.subr.bf16.mxu0 0
    %1254 = vmatpush1.bf16.msra.mxu0 0
    %1255 = vmatprep.subr.bf16.mxu0 0
    %1256 = vmatpush1.bf16.msra.mxu0 0
    %1257 = vmatprep.subr.bf16.mxu0 0
    %1258 = vmatpush1.bf16.msra.mxu0 0
    %1259 = vmatprep.subr.bf16.mxu0 0
    %1260 = vmatpush1.bf16.msra.mxu0 %v1243
    %1261 = vmatprep.subr.bf16.mxu0 0
    %1262 = vmatpush2.bf16.msra.mxu0 0
    %1263 = vmatprep.subr.bf16.mxu0 0
    %1264 = vmatpush2.bf16.msra.mxu0 0
    %1265 = vmatprep.subr.bf16.mxu0 0
    %1266 = vmatpush2.bf16.msra.mxu0 0
    %1267 = vmatprep.subr.bf16.mxu0 0
    %1268 = vmatpush2.bf16.msra.mxu0 0
    %1269 = vmatprep.subr.bf16.mxu0 0
    %1270 = vmatpush2.bf16.msra.mxu0 0
    %1271 = vmatprep.subr.bf16.mxu0 0
    %1272 = vmatpush2.bf16.msra.mxu0 0
    %1273 = vmatprep.subr.bf16.mxu0 0
    %1274 = vmatpush2.bf16.msra.mxu0 0
    %1275 = vmatprep.subr.bf16.mxu0 0
    %1276 = vmatpush2.bf16.msra.mxu0 0
    %1277 = vmatprep.mubr.bf16.mxu0 0
    %1278 = vmatmul.mubr.bf16.gmra.mxu0 %v1240
    %v1279 = vpop.f32.mrf.mxu0
    %v1280 = vadd.f32 0.0, %v1279
    %v1281 = vpop.f32.mrf.mxu0
    %v1282 = vpop.f32.mrf.mxu0
    %v1283 = vpop.f32.mrf.mxu0
    %1284 = vdwg.mxu0
    %1285 = vrot.lane.b32.xlu0 %v181, 64
    %v1286 = vpop.permute.xlu0 %1285
    %v1288 = vsel %vm979, %v1127, 0
    %v1291 = vsel %vm1145, %v1286, 0
    %1293 = vmatprep.subr.bf16.mxu0 0
    %1294 = vmatpush1.bf16.msra.mxu0 0
    %1295 = vmatprep.subr.bf16.mxu0 0
    %1296 = vmatpush1.bf16.msra.mxu0 0
    %1297 = vmatprep.subr.bf16.mxu0 0
    %1298 = vmatpush1.bf16.msra.mxu0 0
    %1299 = vmatprep.subr.bf16.mxu0 0
    %1300 = vmatpush1.bf16.msra.mxu0 0
    %1301 = vmatprep.subr.bf16.mxu0 0
    %1302 = vmatpush1.bf16.msra.mxu0 0
    %1303 = vmatprep.subr.bf16.mxu0 0
    %1304 = vmatpush1.bf16.msra.mxu0 0
    %1305 = vmatprep.subr.bf16.mxu0 0
    %1306 = vmatpush1.bf16.msra.mxu0 0
    %1307 = vmatprep.subr.bf16.mxu0 0
    %1308 = vmatpush1.bf16.msra.mxu0 %v1291
    %1309 = vmatprep.subr.bf16.mxu0 0
    %1310 = vmatpush2.bf16.msra.mxu0 0
    %1311 = vmatprep.subr.bf16.mxu0 0
    %1312 = vmatpush2.bf16.msra.mxu0 0
    %1313 = vmatprep.subr.bf16.mxu0 0
    %1314 = vmatpush2.bf16.msra.mxu0 0
    %1315 = vmatprep.subr.bf16.mxu0 0
    %1316 = vmatpush2.bf16.msra.mxu0 0
    %1317 = vmatprep.subr.bf16.mxu0 0
    %1318 = vmatpush2.bf16.msra.mxu0 0
    %1319 = vmatprep.subr.bf16.mxu0 0
    %1320 = vmatpush2.bf16.msra.mxu0 0
    %1321 = vmatprep.subr.bf16.mxu0 0
    %1322 = vmatpush2.bf16.msra.mxu0 0
    %1323 = vmatprep.subr.bf16.mxu0 0
    %1324 = vmatpush2.bf16.msra.mxu0 0
    %1325 = vmatprep.mubr.bf16.mxu0 0
    %1326 = vmatmul.mubr.bf16.gmra.mxu0 %v1288
    %v1327 = vpop.f32.mrf.mxu0
    %v1328 = vadd.f32 0.0, %v1327
    %v1329 = vpop.f32.mrf.mxu0
    %v1330 = vpop.f32.mrf.mxu0
    %v1331 = vpop.f32.mrf.mxu0
    %1332 = vdwg.mxu0
    %1333 = vrot.lane.b32.xlu0 %v182, 64
    %v1334 = vpop.permute.xlu0 %1333
    %v1336 = vsel %vm979, %v1128, 0
    %v1339 = vsel %vm1145, %v1334, 0
    %1341 = vmatprep.subr.bf16.mxu0 0
    %1342 = vmatpush1.bf16.msra.mxu0 0
    %1343 = vmatprep.subr.bf16.mxu0 0
    %1344 = vmatpush1.bf16.msra.mxu0 0
    %1345 = vmatprep.subr.bf16.mxu0 0
    %1346 = vmatpush1.bf16.msra.mxu0 0
    %1347 = vmatprep.subr.bf16.mxu0 0
    %1348 = vmatpush1.bf16.msra.mxu0 0
    %1349 = vmatprep.subr.bf16.mxu0 0
    %1350 = vmatpush1.bf16.msra.mxu0 0
    %1351 = vmatprep.subr.bf16.mxu0 0
    %1352 = vmatpush1.bf16.msra.mxu0 0
    %1353 = vmatprep.subr.bf16.mxu0 0
    %1354 = vmatpush1.bf16.msra.mxu0 0
    %1355 = vmatprep.subr.bf16.mxu0 0
    %1356 = vmatpush1.bf16.msra.mxu0 %v1339
    %1357 = vmatprep.subr.bf16.mxu0 0
    %1358 = vmatpush2.bf16.msra.mxu0 0
    %1359 = vmatprep.subr.bf16.mxu0 0
    %1360 = vmatpush2.bf16.msra.mxu0 0
    %1361 = vmatprep.subr.bf16.mxu0 0
    %1362 = vmatpush2.bf16.msra.mxu0 0
    %1363 = vmatprep.subr.bf16.mxu0 0
    %1364 = vmatpush2.bf16.msra.mxu0 0
    %1365 = vmatprep.subr.bf16.mxu0 0
    %1366 = vmatpush2.bf16.msra.mxu0 0
    %1367 = vmatprep.subr.bf16.mxu0 0
    %1368 = vmatpush2.bf16.msra.mxu0 0
    %1369 = vmatprep.subr.bf16.mxu0 0
    %1370 = vmatpush2.bf16.msra.mxu0 0
    %1371 = vmatprep.subr.bf16.mxu0 0
    %1372 = vmatpush2.bf16.msra.mxu0 0
    %1373 = vmatprep.mubr.bf16.mxu0 0
    %1374 = vmatmul.mubr.bf16.gmra.mxu0 %v1336
    %v1375 = vpop.f32.mrf.mxu0
    %v1376 = vadd.f32 0.0, %v1375
    %v1377 = vpop.f32.mrf.mxu0
    %v1378 = vpop.f32.mrf.mxu0
    %v1379 = vpop.f32.mrf.mxu0
    %1380 = vdwg.mxu0
    %1381 = vrot.lane.b32.xlu0 %v183, 64
    %v1382 = vpop.permute.xlu0 %1381
    %v1384 = vsel %vm979, %v1129, 0
    %v1387 = vsel %vm1145, %v1382, 0
    %1389 = vmatprep.subr.bf16.mxu0 0
    %1390 = vmatpush1.bf16.msra.mxu0 0
    %1391 = vmatprep.subr.bf16.mxu0 0
    %1392 = vmatpush1.bf16.msra.mxu0 0
    %1393 = vmatprep.subr.bf16.mxu0 0
    %1394 = vmatpush1.bf16.msra.mxu0 0
    %1395 = vmatprep.subr.bf16.mxu0 0
    %1396 = vmatpush1.bf16.msra.mxu0 0
    %1397 = vmatprep.subr.bf16.mxu0 0
    %1398 = vmatpush1.bf16.msra.mxu0 0
    %1399 = vmatprep.subr.bf16.mxu0 0
    %1400 = vmatpush1.bf16.msra.mxu0 0
    %1401 = vmatprep.subr.bf16.mxu0 0
    %1402 = vmatpush1.bf16.msra.mxu0 0
    %1403 = vmatprep.subr.bf16.mxu0 0
    %1404 = vmatpush1.bf16.msra.mxu0 %v1387
    %1405 = vmatprep.subr.bf16.mxu0 0
    %1406 = vmatpush2.bf16.msra.mxu0 0
    %1407 = vmatprep.subr.bf16.mxu0 0
    %1408 = vmatpush2.bf16.msra.mxu0 0
    %1409 = vmatprep.subr.bf16.mxu0 0
    %1410 = vmatpush2.bf16.msra.mxu0 0
    %1411 = vmatprep.subr.bf16.mxu0 0
    %1412 = vmatpush2.bf16.msra.mxu0 0
    %1413 = vmatprep.subr.bf16.mxu0 0
    %1414 = vmatpush2.bf16.msra.mxu0 0
    %1415 = vmatprep.subr.bf16.mxu0 0
    %1416 = vmatpush2.bf16.msra.mxu0 0
    %1417 = vmatprep.subr.bf16.mxu0 0
    %1418 = vmatpush2.bf16.msra.mxu0 0
    %1419 = vmatprep.subr.bf16.mxu0 0
    %1420 = vmatpush2.bf16.msra.mxu0 0
    %1421 = vmatprep.mubr.bf16.mxu0 0
    %1422 = vmatmul.mubr.bf16.gmra.mxu0 %v1384
    %v1423 = vpop.f32.mrf.mxu0
    %v1424 = vadd.f32 0.0, %v1423
    %v1425 = vpop.f32.mrf.mxu0
    %v1426 = vpop.f32.mrf.mxu0
    %v1427 = vpop.f32.mrf.mxu0
    %1428 = vdwg.mxu0
    %1429 = vrot.lane.b32.xlu0 %v184, 64
    %v1430 = vpop.permute.xlu0 %1429
    %v1432 = vsel %vm979, %v1130, 0
    %v1435 = vsel %vm1145, %v1430, 0
    %1437 = vmatprep.subr.bf16.mxu0 0
    %1438 = vmatpush1.bf16.msra.mxu0 0
    %1439 = vmatprep.subr.bf16.mxu0 0
    %1440 = vmatpush1.bf16.msra.mxu0 0
    %1441 = vmatprep.subr.bf16.mxu0 0
    %1442 = vmatpush1.bf16.msra.mxu0 0
    %1443 = vmatprep.subr.bf16.mxu0 0
    %1444 = vmatpush1.bf16.msra.mxu0 0
    %1445 = vmatprep.subr.bf16.mxu0 0
    %1446 = vmatpush1.bf16.msra.mxu0 0
    %1447 = vmatprep.subr.bf16.mxu0 0
    %1448 = vmatpush1.bf16.msra.mxu0 0
    %1449 = vmatprep.subr.bf16.mxu0 0
    %1450 = vmatpush1.bf16.msra.mxu0 0
    %1451 = vmatprep.subr.bf16.mxu0 0
    %1452 = vmatpush1.bf16.msra.mxu0 %v1435
    %1453 = vmatprep.subr.bf16.mxu0 0
    %1454 = vmatpush2.bf16.msra.mxu0 0
    %1455 = vmatprep.subr.bf16.mxu0 0
    %1456 = vmatpush2.bf16.msra.mxu0 0
    %1457 = vmatprep.subr.bf16.mxu0 0
    %1458 = vmatpush2.bf16.msra.mxu0 0
    %1459 = vmatprep.subr.bf16.mxu0 0
    %1460 = vmatpush2.bf16.msra.mxu0 0
    %1461 = vmatprep.subr.bf16.mxu0 0
    %1462 = vmatpush2.bf16.msra.mxu0 0
    %1463 = vmatprep.subr.bf16.mxu0 0
    %1464 = vmatpush2.bf16.msra.mxu0 0
    %1465 = vmatprep.subr.bf16.mxu0 0
    %1466 = vmatpush2.bf16.msra.mxu0 0
    %1467 = vmatprep.subr.bf16.mxu0 0
    %1468 = vmatpush2.bf16.msra.mxu0 0
    %1469 = vmatprep.mubr.bf16.mxu0 0
    %1470 = vmatmul.mubr.bf16.gmra.mxu0 %v1432
    %v1471 = vpop.f32.mrf.mxu0
    %v1472 = vadd.f32 0.0, %v1471
    %v1473 = vpop.f32.mrf.mxu0
    %v1474 = vpop.f32.mrf.mxu0
    %v1475 = vpop.f32.mrf.mxu0
    %1476 = vdwg.mxu0
    %1477 = vrot.lane.b32.xlu0 %v185, 64
    %v1478 = vpop.permute.xlu0 %1477
    %v1480 = vsel %vm979, %v1131, 0
    %v1483 = vsel %vm1145, %v1478, 0
    %1485 = vmatprep.subr.bf16.mxu0 0
    %1486 = vmatpush1.bf16.msra.mxu0 0
    %1487 = vmatprep.subr.bf16.mxu0 0
    %1488 = vmatpush1.bf16.msra.mxu0 0
    %1489 = vmatprep.subr.bf16.mxu0 0
    %1490 = vmatpush1.bf16.msra.mxu0 0
    %1491 = vmatprep.subr.bf16.mxu0 0
    %1492 = vmatpush1.bf16.msra.mxu0 0
    %1493 = vmatprep.subr.bf16.mxu0 0
    %1494 = vmatpush1.bf16.msra.mxu0 0
    %1495 = vmatprep.subr.bf16.mxu0 0
    %1496 = vmatpush1.bf16.msra.mxu0 0
    %1497 = vmatprep.subr.bf16.mxu0 0
    %1498 = vmatpush1.bf16.msra.mxu0 0
    %1499 = vmatprep.subr.bf16.mxu0 0
    %1500 = vmatpush1.bf16.msra.mxu0 %v1483
    %1501 = vmatprep.subr.bf16.mxu0 0
    %1502 = vmatpush2.bf16.msra.mxu0 0
    %1503 = vmatprep.subr.bf16.mxu0 0
    %1504 = vmatpush2.bf16.msra.mxu0 0
    %1505 = vmatprep.subr.bf16.mxu0 0
    %1506 = vmatpush2.bf16.msra.mxu0 0
    %1507 = vmatprep.subr.bf16.mxu0 0
    %1508 = vmatpush2.bf16.msra.mxu0 0
    %1509 = vmatprep.subr.bf16.mxu0 0
    %1510 = vmatpush2.bf16.msra.mxu0 0
    %1511 = vmatprep.subr.bf16.mxu0 0
    %1512 = vmatpush2.bf16.msra.mxu0 0
    %1513 = vmatprep.subr.bf16.mxu0 0
    %1514 = vmatpush2.bf16.msra.mxu0 0
    %1515 = vmatprep.subr.bf16.mxu0 0
    %1516 = vmatpush2.bf16.msra.mxu0 0
    %1517 = vmatprep.mubr.bf16.mxu0 0
    %1518 = vmatmul.mubr.bf16.gmra.mxu0 %v1480
    %v1519 = vpop.f32.mrf.mxu0
    %v1520 = vadd.f32 0.0, %v1519
    %v1521 = vpop.f32.mrf.mxu0
    %v1522 = vpop.f32.mrf.mxu0
    %v1523 = vpop.f32.mrf.mxu0
    %1524 = vdwg.mxu0
    %1525 = vrot.lane.b32.xlu0 %v186, 64
    %v1526 = vpop.permute.xlu0 %1525
    %v1528 = vsel %vm979, %v1132, 0
    %v1531 = vsel %vm1145, %v1526, 0
    %1533 = vmatprep.subr.bf16.mxu0 0
    %1534 = vmatpush1.bf16.msra.mxu0 0
    %1535 = vmatprep.subr.bf16.mxu0 0
    %1536 = vmatpush1.bf16.msra.mxu0 0
    %1537 = vmatprep.subr.bf16.mxu0 0
    %1538 = vmatpush1.bf16.msra.mxu0 0
    %1539 = vmatprep.subr.bf16.mxu0 0
    %1540 = vmatpush1.bf16.msra.mxu0 0
    %1541 = vmatprep.subr.bf16.mxu0 0
    %1542 = vmatpush1.bf16.msra.mxu0 0
    %1543 = vmatprep.subr.bf16.mxu0 0
    %1544 = vmatpush1.bf16.msra.mxu0 0
    %1545 = vmatprep.subr.bf16.mxu0 0
    %1546 = vmatpush1.bf16.msra.mxu0 0
    %1547 = vmatprep.subr.bf16.mxu0 0
    %1548 = vmatpush1.bf16.msra.mxu0 %v1531
    %1549 = vmatprep.subr.bf16.mxu0 0
    %1550 = vmatpush2.bf16.msra.mxu0 0
    %1551 = vmatprep.subr.bf16.mxu0 0
    %1552 = vmatpush2.bf16.msra.mxu0 0
    %1553 = vmatprep.subr.bf16.mxu0 0
    %1554 = vmatpush2.bf16.msra.mxu0 0
    %1555 = vmatprep.subr.bf16.mxu0 0
    %1556 = vmatpush2.bf16.msra.mxu0 0
    %1557 = vmatprep.subr.bf16.mxu0 0
    %1558 = vmatpush2.bf16.msra.mxu0 0
    %1559 = vmatprep.subr.bf16.mxu0 0
    %1560 = vmatpush2.bf16.msra.mxu0 0
    %1561 = vmatprep.subr.bf16.mxu0 0
    %1562 = vmatpush2.bf16.msra.mxu0 0
    %1563 = vmatprep.subr.bf16.mxu0 0
    %1564 = vmatpush2.bf16.msra.mxu0 0
    %1565 = vmatprep.mubr.bf16.mxu0 0
    %1566 = vmatmul.mubr.bf16.gmra.mxu0 %v1528
    %v1567 = vpop.f32.mrf.mxu0
    %v1568 = vadd.f32 0.0, %v1567
    %v1569 = vpop.f32.mrf.mxu0
    %v1570 = vpop.f32.mrf.mxu0
    %v1571 = vpop.f32.mrf.mxu0
    %1572 = vdwg.mxu0
    %1573 = vrot.lane.b32.xlu0 %v187, 64
    %v1574 = vpop.permute.xlu0 %1573
    %v1576 = vsel %vm979, %v1133, 0
    %v1579 = vsel %vm1145, %v1574, 0
    %1581 = vmatprep.subr.bf16.mxu0 0
    %1582 = vmatpush1.bf16.msra.mxu0 0
    %1583 = vmatprep.subr.bf16.mxu0 0
    %1584 = vmatpush1.bf16.msra.mxu0 0
    %1585 = vmatprep.subr.bf16.mxu0 0
    %1586 = vmatpush1.bf16.msra.mxu0 0
    %1587 = vmatprep.subr.bf16.mxu0 0
    %1588 = vmatpush1.bf16.msra.mxu0 0
    %1589 = vmatprep.subr.bf16.mxu0 0
    %1590 = vmatpush1.bf16.msra.mxu0 0
    %1591 = vmatprep.subr.bf16.mxu0 0
    %1592 = vmatpush1.bf16.msra.mxu0 0
    %1593 = vmatprep.subr.bf16.mxu0 0
    %1594 = vmatpush1.bf16.msra.mxu0 0
    %1595 = vmatprep.subr.bf16.mxu0 0
    %1596 = vmatpush1.bf16.msra.mxu0 %v1579
    %1597 = vmatprep.subr.bf16.mxu0 0
    %1598 = vmatpush2.bf16.msra.mxu0 0
    %1599 = vmatprep.subr.bf16.mxu0 0
    %1600 = vmatpush2.bf16.msra.mxu0 0
    %1601 = vmatprep.subr.bf16.mxu0 0
    %1602 = vmatpush2.bf16.msra.mxu0 0
    %1603 = vmatprep.subr.bf16.mxu0 0
    %1604 = vmatpush2.bf16.msra.mxu0 0
    %1605 = vmatprep.subr.bf16.mxu0 0
    %1606 = vmatpush2.bf16.msra.mxu0 0
    %1607 = vmatprep.subr.bf16.mxu0 0
    %1608 = vmatpush2.bf16.msra.mxu0 0
    %1609 = vmatprep.subr.bf16.mxu0 0
    %1610 = vmatpush2.bf16.msra.mxu0 0
    %1611 = vmatprep.subr.bf16.mxu0 0
    %1612 = vmatpush2.bf16.msra.mxu0 0
    %1613 = vmatprep.mubr.bf16.mxu0 0
    %1614 = vmatmul.mubr.bf16.gmra.mxu0 %v1576
    %v1615 = vpop.f32.mrf.mxu0
    %v1616 = vadd.f32 0.0, %v1615
    %v1617 = vpop.f32.mrf.mxu0
    %v1618 = vpop.f32.mrf.mxu0
    %v1619 = vpop.f32.mrf.mxu0
    %1620 = vdwg.mxu0
    %1621 = vrot.lane.b32.xlu0 %v188, 64
    %v1622 = vpop.permute.xlu0 %1621
    %v1624 = vsel %vm979, %v1134, 0
    %v1627 = vsel %vm1145, %v1622, 0
    %1629 = vmatprep.subr.bf16.mxu0 0
    %1630 = vmatpush1.bf16.msra.mxu0 0
    %1631 = vmatprep.subr.bf16.mxu0 0
    %1632 = vmatpush1.bf16.msra.mxu0 0
    %1633 = vmatprep.subr.bf16.mxu0 0
    %1634 = vmatpush1.bf16.msra.mxu0 0
    %1635 = vmatprep.subr.bf16.mxu0 0
    %1636 = vmatpush1.bf16.msra.mxu0 0
    %1637 = vmatprep.subr.bf16.mxu0 0
    %1638 = vmatpush1.bf16.msra.mxu0 0
    %1639 = vmatprep.subr.bf16.mxu0 0
    %1640 = vmatpush1.bf16.msra.mxu0 0
    %1641 = vmatprep.subr.bf16.mxu0 0
    %1642 = vmatpush1.bf16.msra.mxu0 0
    %1643 = vmatprep.subr.bf16.mxu0 0
    %1644 = vmatpush1.bf16.msra.mxu0 %v1627
    %1645 = vmatprep.subr.bf16.mxu0 0
    %1646 = vmatpush2.bf16.msra.mxu0 0
    %1647 = vmatprep.subr.bf16.mxu0 0
    %1648 = vmatpush2.bf16.msra.mxu0 0
    %1649 = vmatprep.subr.bf16.mxu0 0
    %1650 = vmatpush2.bf16.msra.mxu0 0
    %1651 = vmatprep.subr.bf16.mxu0 0
    %1652 = vmatpush2.bf16.msra.mxu0 0
    %1653 = vmatprep.subr.bf16.mxu0 0
    %1654 = vmatpush2.bf16.msra.mxu0 0
    %1655 = vmatprep.subr.bf16.mxu0 0
    %1656 = vmatpush2.bf16.msra.mxu0 0
    %1657 = vmatprep.subr.bf16.mxu0 0
    %1658 = vmatpush2.bf16.msra.mxu0 0
    %1659 = vmatprep.subr.bf16.mxu0 0
    %1660 = vmatpush2.bf16.msra.mxu0 0
    %1661 = vmatprep.mubr.bf16.mxu0 0
    %1662 = vmatmul.mubr.bf16.gmra.mxu0 %v1624
    %v1663 = vpop.f32.mrf.mxu0
    %v1664 = vadd.f32 0.0, %v1663
    %v1665 = vpop.f32.mrf.mxu0
    %v1666 = vpop.f32.mrf.mxu0
    %v1667 = vpop.f32.mrf.mxu0
    %1668 = vdwg.mxu0
    %1669 = vrot.lane.b32.xlu0 %v189, 64
    %v1670 = vpop.permute.xlu0 %1669
    %v1672 = vsel %vm979, %v1135, 0
    %v1675 = vsel %vm1145, %v1670, 0
    %1677 = vmatprep.subr.bf16.mxu0 0
    %1678 = vmatpush1.bf16.msra.mxu0 0
    %1679 = vmatprep.subr.bf16.mxu0 0
    %1680 = vmatpush1.bf16.msra.mxu0 0
    %1681 = vmatprep.subr.bf16.mxu0 0
    %1682 = vmatpush1.bf16.msra.mxu0 0
    %1683 = vmatprep.subr.bf16.mxu0 0
    %1684 = vmatpush1.bf16.msra.mxu0 0
    %1685 = vmatprep.subr.bf16.mxu0 0
    %1686 = vmatpush1.bf16.msra.mxu0 0
    %1687 = vmatprep.subr.bf16.mxu0 0
    %1688 = vmatpush1.bf16.msra.mxu0 0
    %1689 = vmatprep.subr.bf16.mxu0 0
    %1690 = vmatpush1.bf16.msra.mxu0 0
    %1691 = vmatprep.subr.bf16.mxu0 0
    %1692 = vmatpush1.bf16.msra.mxu0 %v1675
    %1693 = vmatprep.subr.bf16.mxu0 0
    %1694 = vmatpush2.bf16.msra.mxu0 0
    %1695 = vmatprep.subr.bf16.mxu0 0
    %1696 = vmatpush2.bf16.msra.mxu0 0
    %1697 = vmatprep.subr.bf16.mxu0 0
    %1698 = vmatpush2.bf16.msra.mxu0 0
    %1699 = vmatprep.subr.bf16.mxu0 0
    %1700 = vmatpush2.bf16.msra.mxu0 0
    %1701 = vmatprep.subr.bf16.mxu0 0
    %1702 = vmatpush2.bf16.msra.mxu0 0
    %1703 = vmatprep.subr.bf16.mxu0 0
    %1704 = vmatpush2.bf16.msra.mxu0 0
    %1705 = vmatprep.subr.bf16.mxu0 0
    %1706 = vmatpush2.bf16.msra.mxu0 0
    %1707 = vmatprep.subr.bf16.mxu0 0
    %1708 = vmatpush2.bf16.msra.mxu0 0
    %1709 = vmatprep.mubr.bf16.mxu0 0
    %1710 = vmatmul.mubr.bf16.gmra.mxu0 %v1672
    %v1711 = vpop.f32.mrf.mxu0
    %v1712 = vadd.f32 0.0, %v1711
    %v1713 = vpop.f32.mrf.mxu0
    %v1714 = vpop.f32.mrf.mxu0
    %v1715 = vpop.f32.mrf.mxu0
    %1716 = vdwg.mxu0
    %1717 = vrot.lane.b32.xlu0 %v190, 64
    %v1718 = vpop.permute.xlu0 %1717
    %v1720 = vsel %vm979, %v1136, 0
    %v1723 = vsel %vm1145, %v1718, 0
    %1725 = vmatprep.subr.bf16.mxu0 0
    %1726 = vmatpush1.bf16.msra.mxu0 0
    %1727 = vmatprep.subr.bf16.mxu0 0
    %1728 = vmatpush1.bf16.msra.mxu0 0
    %1729 = vmatprep.subr.bf16.mxu0 0
    %1730 = vmatpush1.bf16.msra.mxu0 0
    %1731 = vmatprep.subr.bf16.mxu0 0
    %1732 = vmatpush1.bf16.msra.mxu0 0
    %1733 = vmatprep.subr.bf16.mxu0 0
    %1734 = vmatpush1.bf16.msra.mxu0 0
    %1735 = vmatprep.subr.bf16.mxu0 0
    %1736 = vmatpush1.bf16.msra.mxu0 0
    %1737 = vmatprep.subr.bf16.mxu0 0
    %1738 = vmatpush1.bf16.msra.mxu0 0
    %1739 = vmatprep.subr.bf16.mxu0 0
    %1740 = vmatpush1.bf16.msra.mxu0 %v1723
    %1741 = vmatprep.subr.bf16.mxu0 0
    %1742 = vmatpush2.bf16.msra.mxu0 0
    %1743 = vmatprep.subr.bf16.mxu0 0
    %1744 = vmatpush2.bf16.msra.mxu0 0
    %1745 = vmatprep.subr.bf16.mxu0 0
    %1746 = vmatpush2.bf16.msra.mxu0 0
    %1747 = vmatprep.subr.bf16.mxu0 0
    %1748 = vmatpush2.bf16.msra.mxu0 0
    %1749 = vmatprep.subr.bf16.mxu0 0
    %1750 = vmatpush2.bf16.msra.mxu0 0
    %1751 = vmatprep.subr.bf16.mxu0 0
    %1752 = vmatpush2.bf16.msra.mxu0 0
    %1753 = vmatprep.subr.bf16.mxu0 0
    %1754 = vmatpush2.bf16.msra.mxu0 0
    %1755 = vmatprep.subr.bf16.mxu0 0
    %1756 = vmatpush2.bf16.msra.mxu0 0
    %1757 = vmatprep.mubr.bf16.mxu0 0
    %1758 = vmatmul.mubr.bf16.gmra.mxu0 %v1720
    %v1759 = vpop.f32.mrf.mxu0
    %v1760 = vadd.f32 0.0, %v1759
    %v1761 = vpop.f32.mrf.mxu0
    %v1762 = vpop.f32.mrf.mxu0
    %v1763 = vpop.f32.mrf.mxu0
    %1764 = vdwg.mxu0
    %1765 = vrot.lane.b32.xlu0 %v191, 64
    %v1766 = vpop.permute.xlu0 %1765
    %v1768 = vsel %vm979, %v1137, 0
    %v1771 = vsel %vm1145, %v1766, 0
    %1773 = vmatprep.subr.bf16.mxu0 0
    %1774 = vmatpush1.bf16.msra.mxu0 0
    %1775 = vmatprep.subr.bf16.mxu0 0
    %1776 = vmatpush1.bf16.msra.mxu0 0
    %1777 = vmatprep.subr.bf16.mxu0 0
    %1778 = vmatpush1.bf16.msra.mxu0 0
    %1779 = vmatprep.subr.bf16.mxu0 0
    %1780 = vmatpush1.bf16.msra.mxu0 0
    %1781 = vmatprep.subr.bf16.mxu0 0
    %1782 = vmatpush1.bf16.msra.mxu0 0
    %1783 = vmatprep.subr.bf16.mxu0 0
    %1784 = vmatpush1.bf16.msra.mxu0 0
    %1785 = vmatprep.subr.bf16.mxu0 0
    %1786 = vmatpush1.bf16.msra.mxu0 0
    %1787 = vmatprep.subr.bf16.mxu0 0
    %1788 = vmatpush1.bf16.msra.mxu0 %v1771
    %1789 = vmatprep.subr.bf16.mxu0 0
    %1790 = vmatpush2.bf16.msra.mxu0 0
    %1791 = vmatprep.subr.bf16.mxu0 0
    %1792 = vmatpush2.bf16.msra.mxu0 0
    %1793 = vmatprep.subr.bf16.mxu0 0
    %1794 = vmatpush2.bf16.msra.mxu0 0
    %1795 = vmatprep.subr.bf16.mxu0 0
    %1796 = vmatpush2.bf16.msra.mxu0 0
    %1797 = vmatprep.subr.bf16.mxu0 0
    %1798 = vmatpush2.bf16.msra.mxu0 0
    %1799 = vmatprep.subr.bf16.mxu0 0
    %1800 = vmatpush2.bf16.msra.mxu0 0
    %1801 = vmatprep.subr.bf16.mxu0 0
    %1802 = vmatpush2.bf16.msra.mxu0 0
    %1803 = vmatprep.subr.bf16.mxu0 0
    %1804 = vmatpush2.bf16.msra.mxu0 0
    %1805 = vmatprep.mubr.bf16.mxu0 0
    %1806 = vmatmul.mubr.bf16.gmra.mxu0 %v1768
    %v1807 = vpop.f32.mrf.mxu0
    %v1808 = vadd.f32 0.0, %v1807
    %v1809 = vpop.f32.mrf.mxu0
    %v1810 = vpop.f32.mrf.mxu0
    %v1811 = vpop.f32.mrf.mxu0
    %1812 = vdwg.mxu0
    %1813 = vrot.lane.b32.xlu0 %v192, 64
    %v1814 = vpop.permute.xlu0 %1813
    %v1816 = vsel %vm979, %v1138, 0
    %v1819 = vsel %vm1145, %v1814, 0
    %1821 = vmatprep.subr.bf16.mxu0 0
    %1822 = vmatpush1.bf16.msra.mxu0 0
    %1823 = vmatprep.subr.bf16.mxu0 0
    %1824 = vmatpush1.bf16.msra.mxu0 0
    %1825 = vmatprep.subr.bf16.mxu0 0
    %1826 = vmatpush1.bf16.msra.mxu0 0
    %1827 = vmatprep.subr.bf16.mxu0 0
    %1828 = vmatpush1.bf16.msra.mxu0 0
    %1829 = vmatprep.subr.bf16.mxu0 0
    %1830 = vmatpush1.bf16.msra.mxu0 0
    %1831 = vmatprep.subr.bf16.mxu0 0
    %1832 = vmatpush1.bf16.msra.mxu0 0
    %1833 = vmatprep.subr.bf16.mxu0 0
    %1834 = vmatpush1.bf16.msra.mxu0 0
    %1835 = vmatprep.subr.bf16.mxu0 0
    %1836 = vmatpush1.bf16.msra.mxu0 %v1819
    %1837 = vmatprep.subr.bf16.mxu0 0
    %1838 = vmatpush2.bf16.msra.mxu0 0
    %1839 = vmatprep.subr.bf16.mxu0 0
    %1840 = vmatpush2.bf16.msra.mxu0 0
    %1841 = vmatprep.subr.bf16.mxu0 0
    %1842 = vmatpush2.bf16.msra.mxu0 0
    %1843 = vmatprep.subr.bf16.mxu0 0
    %1844 = vmatpush2.bf16.msra.mxu0 0
    %1845 = vmatprep.subr.bf16.mxu0 0
    %1846 = vmatpush2.bf16.msra.mxu0 0
    %1847 = vmatprep.subr.bf16.mxu0 0
    %1848 = vmatpush2.bf16.msra.mxu0 0
    %1849 = vmatprep.subr.bf16.mxu0 0
    %1850 = vmatpush2.bf16.msra.mxu0 0
    %1851 = vmatprep.subr.bf16.mxu0 0
    %1852 = vmatpush2.bf16.msra.mxu0 0
    %1853 = vmatprep.mubr.bf16.mxu0 0
    %1854 = vmatmul.mubr.bf16.gmra.mxu0 %v1816
    %v1855 = vpop.f32.mrf.mxu0
    %v1856 = vadd.f32 0.0, %v1855
    %v1857 = vpop.f32.mrf.mxu0
    %v1858 = vpop.f32.mrf.mxu0
    %v1859 = vpop.f32.mrf.mxu0
    %1860 = vdwg.mxu0
    %1861 = vrot.lane.b32.xlu0 %v193, 64
    %v1862 = vpop.permute.xlu0 %1861
    %v1864 = vsel %vm979, %v1139, 0
    %v1867 = vsel %vm1145, %v1862, 0
    %1869 = vmatprep.subr.bf16.mxu0 0
    %1870 = vmatpush1.bf16.msra.mxu0 0
    %1871 = vmatprep.subr.bf16.mxu0 0
    %1872 = vmatpush1.bf16.msra.mxu0 0
    %1873 = vmatprep.subr.bf16.mxu0 0
    %1874 = vmatpush1.bf16.msra.mxu0 0
    %1875 = vmatprep.subr.bf16.mxu0 0
    %1876 = vmatpush1.bf16.msra.mxu0 0
    %1877 = vmatprep.subr.bf16.mxu0 0
    %1878 = vmatpush1.bf16.msra.mxu0 0
    %1879 = vmatprep.subr.bf16.mxu0 0
    %1880 = vmatpush1.bf16.msra.mxu0 0
    %1881 = vmatprep.subr.bf16.mxu0 0
    %1882 = vmatpush1.bf16.msra.mxu0 0
    %1883 = vmatprep.subr.bf16.mxu0 0
    %1884 = vmatpush1.bf16.msra.mxu0 %v1867
    %1885 = vmatprep.subr.bf16.mxu0 0
    %1886 = vmatpush2.bf16.msra.mxu0 0
    %1887 = vmatprep.subr.bf16.mxu0 0
    %1888 = vmatpush2.bf16.msra.mxu0 0
    %1889 = vmatprep.subr.bf16.mxu0 0
    %1890 = vmatpush2.bf16.msra.mxu0 0
    %1891 = vmatprep.subr.bf16.mxu0 0
    %1892 = vmatpush2.bf16.msra.mxu0 0
    %1893 = vmatprep.subr.bf16.mxu0 0
    %1894 = vmatpush2.bf16.msra.mxu0 0
    %1895 = vmatprep.subr.bf16.mxu0 0
    %1896 = vmatpush2.bf16.msra.mxu0 0
    %1897 = vmatprep.subr.bf16.mxu0 0
    %1898 = vmatpush2.bf16.msra.mxu0 0
    %1899 = vmatprep.subr.bf16.mxu0 0
    %1900 = vmatpush2.bf16.msra.mxu0 0
    %1901 = vmatprep.mubr.bf16.mxu0 0
    %1902 = vmatmul.mubr.bf16.gmra.mxu0 %v1864
    %v1903 = vpop.f32.mrf.mxu0
    %v1904 = vadd.f32 0.0, %v1903
    %v1905 = vpop.f32.mrf.mxu0
    %v1906 = vpop.f32.mrf.mxu0
    %v1907 = vpop.f32.mrf.mxu0
    %1908 = vdwg.mxu0
    %v1909 = vrcp.pop %v1078
    %v1910 = vrcp.pop %v1081
    %v1911 = vrcp.pop %v1084
    %v1912 = vrcp.pop %v1087
    %v1913 = vrcp.pop %v1090
    %v1914 = vrcp.pop %v1093
    %v1915 = vrcp.pop %v1096
    %v1916 = vrcp.pop %v1099
    %v1917 = vrcp.pop %v1102
    %v1918 = vrcp.pop %v1105
    %v1919 = vrcp.pop %v1108
    %v1920 = vrcp.pop %v1111
    %v1921 = vrcp.pop %v1114
    %v1922 = vrcp.pop %v1117
    %v1923 = vrcp.pop %v1120
    %v1924 = vrcp.pop %v1123
    %v1925 = vmul.f32 %v1184, %v1909
    %v1926 = vmul.f32 %v1232, %v1910
    %v1927 = vmul.f32 %v1280, %v1911
    %v1928 = vmul.f32 %v1328, %v1912
    %v1929 = vmul.f32 %v1376, %v1913
    %v1930 = vmul.f32 %v1424, %v1914
    %v1931 = vmul.f32 %v1472, %v1915
    %v1932 = vmul.f32 %v1520, %v1916
    %v1933 = vmul.f32 %v1568, %v1917
    %v1934 = vmul.f32 %v1616, %v1918
    %v1935 = vmul.f32 %v1664, %v1919
    %v1936 = vmul.f32 %v1712, %v1920
    %v1937 = vmul.f32 %v1760, %v1921
    %v1938 = vmul.f32 %v1808, %v1922
    %v1939 = vmul.f32 %v1856, %v1923
    %v1940 = vmul.f32 %v1904, %v1924
    %1943 = vrot.lane.b32.xlu0 %v1926, 4
    %v1944 = vpop.permute.xlu0 %1943
    %1945 = vrot.lane.b32.xlu0 %v1934, 4
    %v1946 = vpop.permute.xlu0 %1945
    %1951 = vrot.lane.b32.xlu0 %v1927, 8
    %v1952 = vpop.permute.xlu0 %1951
    %1953 = vrot.lane.b32.xlu0 %v1935, 8
    %v1954 = vpop.permute.xlu0 %1953
    %1959 = vrot.lane.b32.xlu0 %v1928, 12
    %v1960 = vpop.permute.xlu0 %1959
    %1961 = vrot.lane.b32.xlu0 %v1936, 12
    %v1962 = vpop.permute.xlu0 %1961
    %1967 = vrot.lane.b32.xlu0 %v1929, 16
    %v1968 = vpop.permute.xlu0 %1967
    %1969 = vrot.lane.b32.xlu0 %v1937, 16
    %v1970 = vpop.permute.xlu0 %1969
    %1975 = vrot.lane.b32.xlu0 %v1930, 20
    %v1976 = vpop.permute.xlu0 %1975
    %1977 = vrot.lane.b32.xlu0 %v1938, 20
    %v1978 = vpop.permute.xlu0 %1977
    %1983 = vrot.lane.b32.xlu0 %v1931, 24
    %v1984 = vpop.permute.xlu0 %1983
    %1985 = vrot.lane.b32.xlu0 %v1939, 24
    %v1986 = vpop.permute.xlu0 %1985
    %1991 = vrot.lane.b32.xlu0 %v1932, 28
    %v1992 = vpop.permute.xlu0 %1991
    %1993 = vrot.lane.b32.xlu0 %v1940, 28
    %v1994 = vpop.permute.xlu0 %1993
    %v1997 = vsel %vm197, %v1925, %v1944
    %v1998 = vsel %vm197, %v1933, %v1946
    %v1999 = vsel %vm979, %v1997, %v1952
    %v2000 = vsel %vm979, %v1998, %v1954
    %vm2001 = vcmask 97280
    %v2002 = vsel %vm2001, %v1999, %v1960
    %v2003 = vsel %vm2001, %v2000, %v1962
    %vm2004 = vcmask 130048
    %v2005 = vsel %vm2004, %v2002, %v1968
    %v2006 = vsel %vm2004, %v2003, %v1970
    %vm2007 = vcmask 162816
    %v2008 = vsel %vm2007, %v2005, %v1976
    %v2009 = vsel %vm2007, %v2006, %v1978
    %vm2010 = vcmask 195584
    %v2011 = vsel %vm2010, %v2008, %v1984
    %v2012 = vsel %vm2010, %v2009, %v1986
    %vm2013 = vcmask 228352
    %v2014 = vsel %vm2013, %v2011, %v1992
    %v2015 = vsel %vm2013, %v2012, %v1994
    %v2016 = vpack.c.bf16 %v2015, %v2014
    %v2017 = vld [vmem:[#allocation7] sm:$0xf]
    %v2018 = vld [vmem:[#allocation7 + $0x4] sm:$0xf]
    %v2019 = vld [vmem:[#allocation7 + $0x8] sm:$0xf]
    %v2020 = vld [vmem:[#allocation7 + $0xc] sm:$0xf]
    %v2021 = vld [vmem:[%s4] sm:$0x1]
    %v2023 = vlaneseq
    %v2024 = vshrl.u32 %v2023, 7
    %v2025 = vsub.s32 0, %v2024
    %v2026 = vrot.slane %v2021, %v2025
    %v2032 = vunpack.c.l.b16 %v2017
    %v2033 = vunpack.c.l.b16 %v2018
    %v2034 = vunpack.c.l.b16 %v2019
    %v2035 = vunpack.c.l.b16 %v2020
    %v2036 = vpack.c.b16 %v2033, %v2032
    %v2037 = vpack.c.b16 %v2035, %v2034
    %v2041 = vsel %vm89, %v2016, 0
    %2043 = vmatprep.subr.bf16.mxu0 0
    %2044 = vmatpush1.bf16.msra.mxu0 0
    %2045 = vmatprep.subr.bf16.mxu0 0
    %2046 = vmatpush1.bf16.msra.mxu0 0
    %2047 = vmatprep.subr.bf16.mxu0 0
    %2048 = vmatpush1.bf16.msra.mxu0 0
    %2049 = vmatprep.subr.bf16.mxu0 0
    %2050 = vmatpush1.bf16.msra.mxu0 0
    %2051 = vmatprep.subr.bf16.mxu0 0
    %2052 = vmatpush1.bf16.msra.mxu0 0
    %2053 = vmatprep.subr.bf16.mxu0 0
    %2054 = vmatpush1.bf16.msra.mxu0 0
    %2055 = vmatprep.subr.bf16.mxu0 0
    %2056 = vmatpush1.bf16.msra.mxu0 %v2037
    %2057 = vmatprep.subr.bf16.mxu0 0
    %2058 = vmatpush1.bf16.msra.mxu0 %v2036
    %2059 = vmatprep.subr.bf16.mxu0 0
    %2060 = vmatpush2.bf16.msra.mxu0 0
    %2061 = vmatprep.subr.bf16.mxu0 0
    %2062 = vmatpush2.bf16.msra.mxu0 0
    %2063 = vmatprep.subr.bf16.mxu0 0
    %2064 = vmatpush2.bf16.msra.mxu0 0
    %2065 = vmatprep.subr.bf16.mxu0 0
    %2066 = vmatpush2.bf16.msra.mxu0 0
    %2067 = vmatprep.subr.bf16.mxu0 0
    %2068 = vmatpush2.bf16.msra.mxu0 0
    %2069 = vmatprep.subr.bf16.mxu0 0
    %2070 = vmatpush2.bf16.msra.mxu0 0
    %2071 = vmatprep.subr.bf16.mxu0 0
    %2072 = vmatpush2.bf16.msra.mxu0 0
    %2073 = vmatprep.subr.bf16.mxu0 0
    %2074 = vmatpush2.bf16.msra.mxu0 0
    %2075 = vmatprep.mubr.bf16.mxu0 0
    %2076 = vmatmul.mubr.bf16.gmra.mxu0 %v2041
    %v2077 = vpop.f32.mrf.mxu0
    %v2078 = vadd.f32 %v2026, %v2077
    %v2079 = vpop.f32.mrf.mxu0
    %v2080 = vpop.f32.mrf.mxu0
    %v2081 = vadd.f32 %v2026, %v2080
    %v2082 = vpop.f32.mrf.mxu0
    %2083 = vdwg.mxu0
    %2084 = vst.msk [vmem:[#allocation8] sm:$0xff] %vm89, %v2078
    %2085 = vst.msk [vmem:[#allocation8 + $0x8] sm:$0xff] %vm89, %v2081
    // Predicated region
    $region34: #{tpu_custom_call.1} parent=1 // pred_check
      _
    $region35: #{tpu_custom_call.1} parent=1 // pred_check_branch
      %2087 = sbr.rel (0) target = $region37
    $region36: #{tpu_custom_call.1} parent=1 // pred_region
      %s2089 = ssub.s32 256, 256
      %2090 = vsyncadd [#allocation4], %s2089
      %s2091 = sshll.u32 [#allocation8], 4
      %s2092 = int_to_ptr.vmem [resolvable:$true] %s2091
      %2097 = dma.vmem_to_hbm [thread:$0]  %s2092, 256, %s5, [#allocation4], 128, 128, 8
    $region37: #{tpu_custom_call.1} parent=1 // pred_fallthru
      _
    // Predicated region
    $region38: #{tpu_custom_call.1} parent=1 // pred_check
      _
    $region39: #{tpu_custom_call.1} parent=1 // pred_check_branch
      %2099 = sbr.rel (0) target = $region41
    $region40: #{tpu_custom_call.1} parent=1 // pred_region
      %2100 = dma.done [#allocation4], 256
    $region41: #{tpu_custom_call.1} parent=1 // pred_fallthru
      _
    %2101 = vsyncpa [#allocation3], 1
    %2102 = vsyncpa [#allocation6], 1
    %2103 = vsyncpa [#allocation4], 1

</llo_original>
